<compile_context>
chip_gen: v7x
topology: tpu7x:2x2x1
jax: 0.10.0
libtpu: 0.0.40
codegen_flags: <defaults>
</compile_context>

<pallas_src>
import jax
import jax.numpy as jnp
import numpy as np
from jax import lax
from jax.experimental import pallas as pl
from jax.experimental.pallas import tpu as pltpu


def _rnn_encoder_kernel(x_ref, wxg_ref, bxg_ref, whhf_ref, whhb_ref,
                        out_ref, hn_ref, cn_ref):
    # x_ref:   (S*B, 2)        time-major, flattened
    # wxg_ref: (2, 8H)         fused (fc ∘ w_ih) for [fwd | bwd], gate order i,f,o,g
    # bxg_ref: (1, 8H)         fused bias (b_fc@w_ih.T + b_ih + b_hh) for [fwd | bwd]
    # whhf/whhb: (H, 4H)       recurrent weights (transposed, gate-reordered)
    # out_ref: (S, B, 2H)      fwd -> [:, :, :H], bwd -> [:, :, H:]
    # hn_ref/cn_ref: (2, B, H)
    S, B, twoH = out_ref.shape
    H = twoH // 2

    # ---- Phase 1: input-side gates for all timesteps & both directions, one matmul.
    xg_all = (jnp.dot(x_ref[...], wxg_ref[...], preferred_element_type=jnp.float32)
              + bxg_ref[...])                       # (S*B, 8H)

    whh_f = whhf_ref[...]                           # (H, 4H)
    whh_b = whhb_ref[...]

    def cell(xg, h, c, whh):
        # gate order is [i, f, o, g]: one sigmoid over 3H lanes, one tanh over H lanes.
        g = xg + jnp.dot(h, whh, preferred_element_type=jnp.float32)   # (B, 4H)
        sg = jax.nn.sigmoid(g[:, :3 * H])
        gg = jnp.tanh(g[:, 3 * H:])
        i = sg[:, :H]
        f = sg[:, H:2 * H]
        o = sg[:, 2 * H:3 * H]
        c_new = f * c + i * gg
        h_new = o * jnp.tanh(c_new)
        return h_new, c_new

    zeros = jnp.zeros((B, H), jnp.float32)
    h_f, c_f, h_b, c_b = zeros, zeros, zeros, zeros

    # ---- Phase 2: interleaved fwd/bwd recurrence, fully unrolled (S is small & static).
    for t in range(S):
        s = S - 1 - t
        xg_f = xg_all[t * B:(t + 1) * B, :4 * H]    # forward gates at time t
        xg_b = xg_all[s * B:(s + 1) * B, 4 * H:]    # backward gates at time s
        h_f, c_f = cell(xg_f, h_f, c_f, whh_f)
        h_b, c_b = cell(xg_b, h_b, c_b, whh_b)
        out_ref[t, :, :H] = h_f
        out_ref[s, :, H:] = h_b

    hn_ref[0] = h_f
    hn_ref[1] = h_b
    cn_ref[0] = c_f
    cn_ref[1] = c_b


def init_params(key, hidden_dim):
    """Deterministic synthetic parameters matching nn.Linear(2,H) + bi-LSTM(H,H)."""
    H = hidden_dim
    ks = jax.random.split(key, 10)

    def u(k, shape, bound):
        return jax.random.uniform(k, shape, jnp.float32, -bound, bound)

    fc_bound = 1.0 / np.sqrt(2.0)
    lstm_bound = 1.0 / np.sqrt(float(H))
    return dict(
        w_fc=u(ks[0], (H, 2), fc_bound),          # nn.Linear weight (out, in)
        b_fc=u(ks[1], (H,), fc_bound),
        w_ih_f=u(ks[2], (4 * H, H), lstm_bound),  # weight_ih_l0 (gate order i,f,g,o)
        w_hh_f=u(ks[3], (4 * H, H), lstm_bound),  # weight_hh_l0
        b_ih_f=u(ks[4], (4 * H,), lstm_bound),
        b_hh_f=u(ks[5], (4 * H,), lstm_bound),
        w_ih_b=u(ks[6], (4 * H, H), lstm_bound),  # *_reverse
        w_hh_b=u(ks[7], (4 * H, H), lstm_bound),
        b_ih_b=u(ks[8], (4 * H,), lstm_bound),
        b_hh_b=u(ks[9], (4 * H,), lstm_bound),
    )


def prepare_params(params):
    """One-time weight prep: gate reorder i,f,g,o -> i,f,o,g, FC fusion, bias fold,
    transposes. Done once, outside the per-call path."""
    w_fc = params["w_fc"]                      # (H, 2)
    b_fc = params["b_fc"]                      # (H,)

    def reorder(w):                            # rows/entries [i,f,g,o] -> [i,f,o,g]
        i, f, g, o = jnp.split(w, 4, axis=0)
        return jnp.concatenate([i, f, o, g], axis=0)

    def fuse(w_ih, w_hh, b_ih, b_hh):
        w_ih_r = reorder(w_ih)                 # (4H, H)
        w_hh_r = reorder(w_hh)                 # (4H, H)
        b_r = reorder(b_ih + b_hh)             # (4H,)
        w_xg = (w_ih_r @ w_fc).T               # (2, 4H): x @ w_xg == fc(x) @ w_ih_r.T
        b_xg = b_fc @ w_ih_r.T + b_r           # (4H,)
        return w_xg, b_xg, w_hh_r.T            # whh transposed -> (H, 4H)

    wxg_f, bxg_f, whh_f = fuse(params["w_ih_f"], params["w_hh_f"],
                               params["b_ih_f"], params["b_hh_f"])
    wxg_b, bxg_b, whh_b = fuse(params["w_ih_b"], params["w_hh_b"],
                               params["b_ih_b"], params["b_hh_b"])
    return dict(
        wxg=jnp.concatenate([wxg_f, wxg_b], axis=1),          # (2, 8H)
        bxg=jnp.concatenate([bxg_f, bxg_b])[None, :],         # (1, 8H)
        whh_f=whh_f,                                          # (H, 4H)
        whh_b=whh_b,                                          # (H, 4H)
    )


def rnn_encoder(x, prep, hidden_dim):
    """x: (B, S, 2) f32, prep: prepare_params(...)
    -> (encode_output (B, S, 2H), (h_n (2, B, H), c_n (2, B, H)))."""
    B, S, _ = x.shape
    H = hidden_dim
    f32 = jnp.float32

    # time-major, flattened for the single fused input-projection matmul
    x_flat = jnp.transpose(x, (1, 0, 2)).astype(f32).reshape(S * B, 2)

    vmem = pl.BlockSpec(memory_space=pltpu.MemorySpace.VMEM)
    out, hn, cn = pl.pallas_call(
        _rnn_encoder_kernel,
        out_shape=(
            jax.ShapeDtypeStruct((S, B, 2 * H), f32),   # [fwd | bwd], time-major
            jax.ShapeDtypeStruct((2, B, H), f32),       # h_n
            jax.ShapeDtypeStruct((2, B, H), f32),       # c_n
        ),
        in_specs=[vmem] * 5,
        out_specs=(vmem, vmem, vmem),
    )(x_flat, prep["wxg"], prep["bxg"], prep["whh_f"], prep["whh_b"])

    encode_output = jnp.transpose(out, (1, 0, 2))       # back to batch_first
    return encode_output, (hn, cn)


def ref_forward(x, params):
    """Pure-JAX reference (mirrors torch nn.Linear + bidirectional nn.LSTM)."""
    H = params["w_fc"].shape[0]
    xh = x @ params["w_fc"].T + params["b_fc"]          # (B, S, H)
    xt = jnp.transpose(xh, (1, 0, 2))                   # (S, B, H)
    B = x.shape[0]

    def run(xseq, wih, whh, b):
        def step(carry, x_t):
            h, c = carry
            g = x_t @ wih.T + h @ whh.T + b
            i, f, gg, o = jnp.split(g, 4, axis=-1)
            c = jax.nn.sigmoid(f) * c + jax.nn.sigmoid(i) * jnp.tanh(gg)
            h = jax.nn.sigmoid(o) * jnp.tanh(c)
            return (h, c), h

        init = (jnp.zeros((B, H), jnp.float32), jnp.zeros((B, H), jnp.float32))
        (h, c), ys = lax.scan(step, init, xseq)
        return ys, h, c

    out_f, hf, cf = run(xt, params["w_ih_f"], params["w_hh_f"],
                        params["b_ih_f"] + params["b_hh_f"])
    out_b_rev, hb, cb = run(xt[::-1], params["w_ih_b"], params["w_hh_b"],
                            params["b_ih_b"] + params["b_hh_b"])
    out_b = out_b_rev[::-1]
    out = jnp.transpose(jnp.concatenate([out_f, out_b], axis=-1), (1, 0, 2))
    return out, (jnp.stack([hf, hb]), jnp.stack([cf, cb]))


if __name__ == "__main__":
    B, S, H = 2, 8, 32
    key = jax.random.PRNGKey(0)
    kx, kp = jax.random.split(key)
    x = jax.random.normal(kx, (B, S, 2), jnp.float32)
    params = init_params(kp, H)

    prep = prepare_params(params)                       # one-time weight prep
    fwd = jax.jit(rnn_encoder, static_argnums=2)

    encode_output, (h_n, c_n) = fwd(x, prep, H)
    jax.block_until_ready((encode_output, h_n, c_n))

    assert encode_output.shape == (B, S, 2 * H)
    assert h_n.shape == (2, B, H) and c_n.shape == (2, B, H)

    ref_out, (ref_hn, ref_cn) = ref_forward(x, params)
    np.testing.assert_allclose(np.asarray(encode_output), np.asarray(ref_out),
                               rtol=1e-4, atol=1e-5)
    np.testing.assert_allclose(np.asarray(h_n), np.asarray(ref_hn), rtol=1e-4, atol=1e-5)
    np.testing.assert_allclose(np.asarray(c_n), np.asarray(ref_cn), rtol=1e-4, atol=1e-5)

    print("KERNEL_OK")
</pallas_src>

<mosaic_0001>
module attributes {stable_mosaic.version = 11 : i64} {
  func.func @_rnn_encoder_kernel(%arg0: memref<16x2xf32, #tpu.memory_space<vmem>>, %arg1: memref<2x256xf32, #tpu.memory_space<vmem>>, %arg2: memref<1x256xf32, #tpu.memory_space<vmem>>, %arg3: memref<32x128xf32, #tpu.memory_space<vmem>>, %arg4: memref<32x128xf32, #tpu.memory_space<vmem>>, %arg5: memref<8x2x64xf32, #tpu.memory_space<vmem>>, %arg6: memref<2x2x32xf32, #tpu.memory_space<vmem>>, %arg7: memref<2x2x32xf32, #tpu.memory_space<vmem>>) attributes {dimension_semantics = [], scalar_prefetch = 0 : i64, scratch_operands = 0 : i64, tpu.core_type = #tpu.core_type<tc>} {
    %c0 = arith.constant 0 : index
    %c0_0 = arith.constant 0 : index
    %0 = vector.load %arg0[%c0, %c0_0] : memref<16x2xf32, #tpu.memory_space<vmem>>, vector<16x2xf32>
    %c0_1 = arith.constant 0 : index
    %c0_2 = arith.constant 0 : index
    %1 = vector.load %arg1[%c0_1, %c0_2] : memref<2x256xf32, #tpu.memory_space<vmem>>, vector<2x256xf32>
    %cst = arith.constant dense<0.000000e+00> : vector<16x256xf32>
    %2 = tpu.matmul %0, %1, %cst {dimension_numbers = #tpu.dot_dimension_numbers<[1], [0], [0], [1], [0, 0, 1, 1], [], []>} : vector<16x2xf32>, vector<2x256xf32>, vector<16x256xf32> -> vector<16x256xf32>
    %c0_3 = arith.constant 0 : index
    %c0_4 = arith.constant 0 : index
    %3 = vector.load %arg2[%c0_3, %c0_4] : memref<1x256xf32, #tpu.memory_space<vmem>>, vector<1x256xf32>
    %4 = vector.broadcast %3 : vector<1x256xf32> to vector<16x256xf32>
    %5 = arith.addf %2, %4 : vector<16x256xf32>
    %c0_5 = arith.constant 0 : index
    %c0_6 = arith.constant 0 : index
    %6 = vector.load %arg3[%c0_5, %c0_6] : memref<32x128xf32, #tpu.memory_space<vmem>>, vector<32x128xf32>
    %c0_7 = arith.constant 0 : index
    %c0_8 = arith.constant 0 : index
    %7 = vector.load %arg4[%c0_7, %c0_8] : memref<32x128xf32, #tpu.memory_space<vmem>>, vector<32x128xf32>
    %cst_9 = arith.constant 0.000000e+00 : f32
    %8 = vector.broadcast %cst_9 : f32 to vector<2x32xf32>
    %9 = vector.extract_strided_slice %5 {offsets = [0, 0], sizes = [2, 128], strides = [1, 1]} : vector<16x256xf32> to vector<2x128xf32>
    %10 = vector.extract_strided_slice %5 {offsets = [14, 128], sizes = [2, 128], strides = [1, 1]} : vector<16x256xf32> to vector<2x128xf32>
    %cst_10 = arith.constant dense<0.000000e+00> : vector<2x128xf32>
    %11 = tpu.matmul %8, %6, %cst_10 {dimension_numbers = #tpu.dot_dimension_numbers<[1], [0], [0], [1], [0, 0, 1, 1], [], []>} : vector<2x32xf32>, vector<32x128xf32>, vector<2x128xf32> -> vector<2x128xf32>
    %12 = arith.addf %9, %11 : vector<2x128xf32>
    %13 = vector.extract_strided_slice %12 {offsets = [0, 0], sizes = [2, 96], strides = [1, 1]} : vector<2x128xf32> to vector<2x96xf32>
    %14 = arith.negf %13 : vector<2x96xf32>
    %15 = math.exp %14 : vector<2x96xf32>
    %cst_11 = arith.constant 1.000000e+00 : f32
    %16 = vector.broadcast %cst_11 : f32 to vector<2x96xf32>
    %17 = arith.addf %16, %15 : vector<2x96xf32>
    %18 = arith.divf %16, %17 : vector<2x96xf32>
    %19 = vector.extract_strided_slice %12 {offsets = [0, 96], sizes = [2, 32], strides = [1, 1]} : vector<2x128xf32> to vector<2x32xf32>
    %20 = math.tanh %19 : vector<2x32xf32>
    %21 = vector.extract_strided_slice %18 {offsets = [0, 0], sizes = [2, 32], strides = [1, 1]} : vector<2x96xf32> to vector<2x32xf32>
    %22 = vector.extract_strided_slice %18 {offsets = [0, 32], sizes = [2, 32], strides = [1, 1]} : vector<2x96xf32> to vector<2x32xf32>
    %23 = vector.extract_strided_slice %18 {offsets = [0, 64], sizes = [2, 32], strides = [1, 1]} : vector<2x96xf32> to vector<2x32xf32>
    %24 = arith.mulf %22, %8 : vector<2x32xf32>
    %25 = arith.mulf %21, %20 : vector<2x32xf32>
    %26 = arith.addf %24, %25 : vector<2x32xf32>
    %27 = math.tanh %26 : vector<2x32xf32>
    %28 = arith.mulf %23, %27 : vector<2x32xf32>
    %cst_12 = arith.constant dense<0.000000e+00> : vector<2x128xf32>
    %29 = tpu.matmul %8, %7, %cst_12 {dimension_numbers = #tpu.dot_dimension_numbers<[1], [0], [0], [1], [0, 0, 1, 1], [], []>} : vector<2x32xf32>, vector<32x128xf32>, vector<2x128xf32> -> vector<2x128xf32>
    %30 = arith.addf %10, %29 : vector<2x128xf32>
    %31 = vector.extract_strided_slice %30 {offsets = [0, 0], sizes = [2, 96], strides = [1, 1]} : vector<2x128xf32> to vector<2x96xf32>
    %32 = arith.negf %31 : vector<2x96xf32>
    %33 = math.exp %32 : vector<2x96xf32>
    %cst_13 = arith.constant 1.000000e+00 : f32
    %34 = vector.broadcast %cst_13 : f32 to vector<2x96xf32>
    %35 = arith.addf %34, %33 : vector<2x96xf32>
    %36 = arith.divf %34, %35 : vector<2x96xf32>
    %37 = vector.extract_strided_slice %30 {offsets = [0, 96], sizes = [2, 32], strides = [1, 1]} : vector<2x128xf32> to vector<2x32xf32>
    %38 = math.tanh %37 : vector<2x32xf32>
    %39 = vector.extract_strided_slice %36 {offsets = [0, 0], sizes = [2, 32], strides = [1, 1]} : vector<2x96xf32> to vector<2x32xf32>
    %40 = vector.extract_strided_slice %36 {offsets = [0, 32], sizes = [2, 32], strides = [1, 1]} : vector<2x96xf32> to vector<2x32xf32>
    %41 = vector.extract_strided_slice %36 {offsets = [0, 64], sizes = [2, 32], strides = [1, 1]} : vector<2x96xf32> to vector<2x32xf32>
    %42 = arith.mulf %40, %8 : vector<2x32xf32>
    %43 = arith.mulf %39, %38 : vector<2x32xf32>
    %44 = arith.addf %42, %43 : vector<2x32xf32>
    %45 = math.tanh %44 : vector<2x32xf32>
    %46 = arith.mulf %41, %45 : vector<2x32xf32>
    %c0_14 = arith.constant 0 : index
    %c0_15 = arith.constant 0 : index
    %c0_16 = arith.constant 0 : index
    %47 = vector.load %arg5[%c0_14, %c0_15, %c0_16] : memref<8x2x64xf32, #tpu.memory_space<vmem>>, vector<1x2x32xf32>
    %48 = vector.shape_cast %47 : vector<1x2x32xf32> to vector<2x32xf32>
    %49 = vector.shape_cast %28 : vector<2x32xf32> to vector<1x2x32xf32>
    tpu.vector_store %arg5[%c0_14, %c0_15, %c0_16], %49 {strides = array<i32>} : memref<8x2x64xf32, #tpu.memory_space<vmem>>, vector<1x2x32xf32>,
    %c7 = arith.constant 7 : index
    %c0_17 = arith.constant 0 : index
    %c32 = arith.constant 32 : index
    %50 = vector.load %arg5[%c7, %c0_17, %c32] : memref<8x2x64xf32, #tpu.memory_space<vmem>>, vector<1x2x32xf32>
    %51 = vector.shape_cast %50 : vector<1x2x32xf32> to vector<2x32xf32>
    %52 = vector.shape_cast %46 : vector<2x32xf32> to vector<1x2x32xf32>
    tpu.vector_store %arg5[%c7, %c0_17, %c32], %52 {strides = array<i32>} : memref<8x2x64xf32, #tpu.memory_space<vmem>>, vector<1x2x32xf32>,
    %53 = vector.extract_strided_slice %5 {offsets = [2, 0], sizes = [2, 128], strides = [1, 1]} : vector<16x256xf32> to vector<2x128xf32>
    %54 = vector.extract_strided_slice %5 {offsets = [12, 128], sizes = [2, 128], strides = [1, 1]} : vector<16x256xf32> to vector<2x128xf32>
    %cst_18 = arith.constant dense<0.000000e+00> : vector<2x128xf32>
    %55 = tpu.matmul %28, %6, %cst_18 {dimension_numbers = #tpu.dot_dimension_numbers<[1], [0], [0], [1], [0, 0, 1, 1], [], []>} : vector<2x32xf32>, vector<32x128xf32>, vector<2x128xf32> -> vector<2x128xf32>
    %56 = arith.addf %53, %55 : vector<2x128xf32>
    %57 = vector.extract_strided_slice %56 {offsets = [0, 0], sizes = [2, 96], strides = [1, 1]} : vector<2x128xf32> to vector<2x96xf32>
    %58 = arith.negf %57 : vector<2x96xf32>
    %59 = math.exp %58 : vector<2x96xf32>
    %cst_19 = arith.constant 1.000000e+00 : f32
    %60 = vector.broadcast %cst_19 : f32 to vector<2x96xf32>
    %61 = arith.addf %60, %59 : vector<2x96xf32>
    %62 = arith.divf %60, %61 : vector<2x96xf32>
    %63 = vector.extract_strided_slice %56 {offsets = [0, 96], sizes = [2, 32], strides = [1, 1]} : vector<2x128xf32> to vector<2x32xf32>
    %64 = math.tanh %63 : vector<2x32xf32>
    %65 = vector.extract_strided_slice %62 {offsets = [0, 0], sizes = [2, 32], strides = [1, 1]} : vector<2x96xf32> to vector<2x32xf32>
    %66 = vector.extract_strided_slice %62 {offsets = [0, 32], sizes = [2, 32], strides = [1, 1]} : vector<2x96xf32> to vector<2x32xf32>
    %67 = vector.extract_strided_slice %62 {offsets = [0, 64], sizes = [2, 32], strides = [1, 1]} : vector<2x96xf32> to vector<2x32xf32>
    %68 = arith.mulf %66, %26 : vector<2x32xf32>
    %69 = arith.mulf %65, %64 : vector<2x32xf32>
    %70 = arith.addf %68, %69 : vector<2x32xf32>
    %71 = math.tanh %70 : vector<2x32xf32>
    %72 = arith.mulf %67, %71 : vector<2x32xf32>
    %cst_20 = arith.constant dense<0.000000e+00> : vector<2x128xf32>
    %73 = tpu.matmul %46, %7, %cst_20 {dimension_numbers = #tpu.dot_dimension_numbers<[1], [0], [0], [1], [0, 0, 1, 1], [], []>} : vector<2x32xf32>, vector<32x128xf32>, vector<2x128xf32> -> vector<2x128xf32>
    %74 = arith.addf %54, %73 : vector<2x128xf32>
    %75 = vector.extract_strided_slice %74 {offsets = [0, 0], sizes = [2, 96], strides = [1, 1]} : vector<2x128xf32> to vector<2x96xf32>
    %76 = arith.negf %75 : vector<2x96xf32>
    %77 = math.exp %76 : vector<2x96xf32>
    %cst_21 = arith.constant 1.000000e+00 : f32
    %78 = vector.broadcast %cst_21 : f32 to vector<2x96xf32>
    %79 = arith.addf %78, %77 : vector<2x96xf32>
    %80 = arith.divf %78, %79 : vector<2x96xf32>
    %81 = vector.extract_strided_slice %74 {offsets = [0, 96], sizes = [2, 32], strides = [1, 1]} : vector<2x128xf32> to vector<2x32xf32>
    %82 = math.tanh %81 : vector<2x32xf32>
    %83 = vector.extract_strided_slice %80 {offsets = [0, 0], sizes = [2, 32], strides = [1, 1]} : vector<2x96xf32> to vector<2x32xf32>
    %84 = vector.extract_strided_slice %80 {offsets = [0, 32], sizes = [2, 32], strides = [1, 1]} : vector<2x96xf32> to vector<2x32xf32>
    %85 = vector.extract_strided_slice %80 {offsets = [0, 64], sizes = [2, 32], strides = [1, 1]} : vector<2x96xf32> to vector<2x32xf32>
    %86 = arith.mulf %84, %44 : vector<2x32xf32>
    %87 = arith.mulf %83, %82 : vector<2x32xf32>
    %88 = arith.addf %86, %87 : vector<2x32xf32>
    %89 = math.tanh %88 : vector<2x32xf32>
    %90 = arith.mulf %85, %89 : vector<2x32xf32>
    %c1 = arith.constant 1 : index
    %c0_22 = arith.constant 0 : index
    %c0_23 = arith.constant 0 : index
    %91 = vector.load %arg5[%c1, %c0_22, %c0_23] : memref<8x2x64xf32, #tpu.memory_space<vmem>>, vector<1x2x32xf32>
    %92 = vector.shape_cast %91 : vector<1x2x32xf32> to vector<2x32xf32>
    %93 = vector.shape_cast %72 : vector<2x32xf32> to vector<1x2x32xf32>
    tpu.vector_store %arg5[%c1, %c0_22, %c0_23], %93 {strides = array<i32>} : memref<8x2x64xf32, #tpu.memory_space<vmem>>, vector<1x2x32xf32>,
    %c6 = arith.constant 6 : index
    %c0_24 = arith.constant 0 : index
    %c32_25 = arith.constant 32 : index
    %94 = vector.load %arg5[%c6, %c0_24, %c32_25] : memref<8x2x64xf32, #tpu.memory_space<vmem>>, vector<1x2x32xf32>
    %95 = vector.shape_cast %94 : vector<1x2x32xf32> to vector<2x32xf32>
    %96 = vector.shape_cast %90 : vector<2x32xf32> to vector<1x2x32xf32>
    tpu.vector_store %arg5[%c6, %c0_24, %c32_25], %96 {strides = array<i32>} : memref<8x2x64xf32, #tpu.memory_space<vmem>>, vector<1x2x32xf32>,
    %97 = vector.extract_strided_slice %5 {offsets = [4, 0], sizes = [2, 128], strides = [1, 1]} : vector<16x256xf32> to vector<2x128xf32>
    %98 = vector.extract_strided_slice %5 {offsets = [10, 128], sizes = [2, 128], strides = [1, 1]} : vector<16x256xf32> to vector<2x128xf32>
    %cst_26 = arith.constant dense<0.000000e+00> : vector<2x128xf32>
    %99 = tpu.matmul %72, %6, %cst_26 {dimension_numbers = #tpu.dot_dimension_numbers<[1], [0], [0], [1], [0, 0, 1, 1], [], []>} : vector<2x32xf32>, vector<32x128xf32>, vector<2x128xf32> -> vector<2x128xf32>
    %100 = arith.addf %97, %99 : vector<2x128xf32>
    %101 = vector.extract_strided_slice %100 {offsets = [0, 0], sizes = [2, 96], strides = [1, 1]} : vector<2x128xf32> to vector<2x96xf32>
    %102 = arith.negf %101 : vector<2x96xf32>
    %103 = math.exp %102 : vector<2x96xf32>
    %cst_27 = arith.constant 1.000000e+00 : f32
    %104 = vector.broadcast %cst_27 : f32 to vector<2x96xf32>
    %105 = arith.addf %104, %103 : vector<2x96xf32>
    %106 = arith.divf %104, %105 : vector<2x96xf32>
    %107 = vector.extract_strided_slice %100 {offsets = [0, 96], sizes = [2, 32], strides = [1, 1]} : vector<2x128xf32> to vector<2x32xf32>
    %108 = math.tanh %107 : vector<2x32xf32>
    %109 = vector.extract_strided_slice %106 {offsets = [0, 0], sizes = [2, 32], strides = [1, 1]} : vector<2x96xf32> to vector<2x32xf32>
    %110 = vector.extract_strided_slice %106 {offsets = [0, 32], sizes = [2, 32], strides = [1, 1]} : vector<2x96xf32> to vector<2x32xf32>
    %111 = vector.extract_strided_slice %106 {offsets = [0, 64], sizes = [2, 32], strides = [1, 1]} : vector<2x96xf32> to vector<2x32xf32>
    %112 = arith.mulf %110, %70 : vector<2x32xf32>
    %113 = arith.mulf %109, %108 : vector<2x32xf32>
    %114 = arith.addf %112, %113 : vector<2x32xf32>
    %115 = math.tanh %114 : vector<2x32xf32>
    %116 = arith.mulf %111, %115 : vector<2x32xf32>
    %cst_28 = arith.constant dense<0.000000e+00> : vector<2x128xf32>
    %117 = tpu.matmul %90, %7, %cst_28 {dimension_numbers = #tpu.dot_dimension_numbers<[1], [0], [0], [1], [0, 0, 1, 1], [], []>} : vector<2x32xf32>, vector<32x128xf32>, vector<2x128xf32> -> vector<2x128xf32>
    %118 = arith.addf %98, %117 : vector<2x128xf32>
    %119 = vector.extract_strided_slice %118 {offsets = [0, 0], sizes = [2, 96], strides = [1, 1]} : vector<2x128xf32> to vector<2x96xf32>
    %120 = arith.negf %119 : vector<2x96xf32>
    %121 = math.exp %120 : vector<2x96xf32>
    %cst_29 = arith.constant 1.000000e+00 : f32
    %122 = vector.broadcast %cst_29 : f32 to vector<2x96xf32>
    %123 = arith.addf %122, %121 : vector<2x96xf32>
    %124 = arith.divf %122, %123 : vector<2x96xf32>
    %125 = vector.extract_strided_slice %118 {offsets = [0, 96], sizes = [2, 32], strides = [1, 1]} : vector<2x128xf32> to vector<2x32xf32>
    %126 = math.tanh %125 : vector<2x32xf32>
    %127 = vector.extract_strided_slice %124 {offsets = [0, 0], sizes = [2, 32], strides = [1, 1]} : vector<2x96xf32> to vector<2x32xf32>
    %128 = vector.extract_strided_slice %124 {offsets = [0, 32], sizes = [2, 32], strides = [1, 1]} : vector<2x96xf32> to vector<2x32xf32>
    %129 = vector.extract_strided_slice %124 {offsets = [0, 64], sizes = [2, 32], strides = [1, 1]} : vector<2x96xf32> to vector<2x32xf32>
    %130 = arith.mulf %128, %88 : vector<2x32xf32>
    %131 = arith.mulf %127, %126 : vector<2x32xf32>
    %132 = arith.addf %130, %131 : vector<2x32xf32>
    %133 = math.tanh %132 : vector<2x32xf32>
    %134 = arith.mulf %129, %133 : vector<2x32xf32>
    %c2 = arith.constant 2 : index
    %c0_30 = arith.constant 0 : index
    %c0_31 = arith.constant 0 : index
    %135 = vector.load %arg5[%c2, %c0_30, %c0_31] : memref<8x2x64xf32, #tpu.memory_space<vmem>>, vector<1x2x32xf32>
    %136 = vector.shape_cast %135 : vector<1x2x32xf32> to vector<2x32xf32>
    %137 = vector.shape_cast %116 : vector<2x32xf32> to vector<1x2x32xf32>
    tpu.vector_store %arg5[%c2, %c0_30, %c0_31], %137 {strides = array<i32>} : memref<8x2x64xf32, #tpu.memory_space<vmem>>, vector<1x2x32xf32>,
    %c5 = arith.constant 5 : index
    %c0_32 = arith.constant 0 : index
    %c32_33 = arith.constant 32 : index
    %138 = vector.load %arg5[%c5, %c0_32, %c32_33] : memref<8x2x64xf32, #tpu.memory_space<vmem>>, vector<1x2x32xf32>
    %139 = vector.shape_cast %138 : vector<1x2x32xf32> to vector<2x32xf32>
    %140 = vector.shape_cast %134 : vector<2x32xf32> to vector<1x2x32xf32>
    tpu.vector_store %arg5[%c5, %c0_32, %c32_33], %140 {strides = array<i32>} : memref<8x2x64xf32, #tpu.memory_space<vmem>>, vector<1x2x32xf32>,
    %141 = vector.extract_strided_slice %5 {offsets = [6, 0], sizes = [2, 128], strides = [1, 1]} : vector<16x256xf32> to vector<2x128xf32>
    %142 = vector.extract_strided_slice %5 {offsets = [8, 128], sizes = [2, 128], strides = [1, 1]} : vector<16x256xf32> to vector<2x128xf32>
    %cst_34 = arith.constant dense<0.000000e+00> : vector<2x128xf32>
    %143 = tpu.matmul %116, %6, %cst_34 {dimension_numbers = #tpu.dot_dimension_numbers<[1], [0], [0], [1], [0, 0, 1, 1], [], []>} : vector<2x32xf32>, vector<32x128xf32>, vector<2x128xf32> -> vector<2x128xf32>
    %144 = arith.addf %141, %143 : vector<2x128xf32>
    %145 = vector.extract_strided_slice %144 {offsets = [0, 0], sizes = [2, 96], strides = [1, 1]} : vector<2x128xf32> to vector<2x96xf32>
    %146 = arith.negf %145 : vector<2x96xf32>
    %147 = math.exp %146 : vector<2x96xf32>
    %cst_35 = arith.constant 1.000000e+00 : f32
    %148 = vector.broadcast %cst_35 : f32 to vector<2x96xf32>
    %149 = arith.addf %148, %147 : vector<2x96xf32>
    %150 = arith.divf %148, %149 : vector<2x96xf32>
    %151 = vector.extract_strided_slice %144 {offsets = [0, 96], sizes = [2, 32], strides = [1, 1]} : vector<2x128xf32> to vector<2x32xf32>
    %152 = math.tanh %151 : vector<2x32xf32>
    %153 = vector.extract_strided_slice %150 {offsets = [0, 0], sizes = [2, 32], strides = [1, 1]} : vector<2x96xf32> to vector<2x32xf32>
    %154 = vector.extract_strided_slice %150 {offsets = [0, 32], sizes = [2, 32], strides = [1, 1]} : vector<2x96xf32> to vector<2x32xf32>
    %155 = vector.extract_strided_slice %150 {offsets = [0, 64], sizes = [2, 32], strides = [1, 1]} : vector<2x96xf32> to vector<2x32xf32>
    %156 = arith.mulf %154, %114 : vector<2x32xf32>
    %157 = arith.mulf %153, %152 : vector<2x32xf32>
    %158 = arith.addf %156, %157 : vector<2x32xf32>
    %159 = math.tanh %158 : vector<2x32xf32>
    %160 = arith.mulf %155, %159 : vector<2x32xf32>
    %cst_36 = arith.constant dense<0.000000e+00> : vector<2x128xf32>
    %161 = tpu.matmul %134, %7, %cst_36 {dimension_numbers = #tpu.dot_dimension_numbers<[1], [0], [0], [1], [0, 0, 1, 1], [], []>} : vector<2x32xf32>, vector<32x128xf32>, vector<2x128xf32> -> vector<2x128xf32>
    %162 = arith.addf %142, %161 : vector<2x128xf32>
    %163 = vector.extract_strided_slice %162 {offsets = [0, 0], sizes = [2, 96], strides = [1, 1]} : vector<2x128xf32> to vector<2x96xf32>
    %164 = arith.negf %163 : vector<2x96xf32>
    %165 = math.exp %164 : vector<2x96xf32>
    %cst_37 = arith.constant 1.000000e+00 : f32
    %166 = vector.broadcast %cst_37 : f32 to vector<2x96xf32>
    %167 = arith.addf %166, %165 : vector<2x96xf32>
    %168 = arith.divf %166, %167 : vector<2x96xf32>
    %169 = vector.extract_strided_slice %162 {offsets = [0, 96], sizes = [2, 32], strides = [1, 1]} : vector<2x128xf32> to vector<2x32xf32>
    %170 = math.tanh %169 : vector<2x32xf32>
    %171 = vector.extract_strided_slice %168 {offsets = [0, 0], sizes = [2, 32], strides = [1, 1]} : vector<2x96xf32> to vector<2x32xf32>
    %172 = vector.extract_strided_slice %168 {offsets = [0, 32], sizes = [2, 32], strides = [1, 1]} : vector<2x96xf32> to vector<2x32xf32>
    %173 = vector.extract_strided_slice %168 {offsets = [0, 64], sizes = [2, 32], strides = [1, 1]} : vector<2x96xf32> to vector<2x32xf32>
    %174 = arith.mulf %172, %132 : vector<2x32xf32>
    %175 = arith.mulf %171, %170 : vector<2x32xf32>
    %176 = arith.addf %174, %175 : vector<2x32xf32>
    %177 = math.tanh %176 : vector<2x32xf32>
    %178 = arith.mulf %173, %177 : vector<2x32xf32>
    %c3 = arith.constant 3 : index
    %c0_38 = arith.constant 0 : index
    %c0_39 = arith.constant 0 : index
    %179 = vector.load %arg5[%c3, %c0_38, %c0_39] : memref<8x2x64xf32, #tpu.memory_space<vmem>>, vector<1x2x32xf32>
    %180 = vector.shape_cast %179 : vector<1x2x32xf32> to vector<2x32xf32>
    %181 = vector.shape_cast %160 : vector<2x32xf32> to vector<1x2x32xf32>
    tpu.vector_store %arg5[%c3, %c0_38, %c0_39], %181 {strides = array<i32>} : memref<8x2x64xf32, #tpu.memory_space<vmem>>, vector<1x2x32xf32>,
    %c4 = arith.constant 4 : index
    %c0_40 = arith.constant 0 : index
    %c32_41 = arith.constant 32 : index
    %182 = vector.load %arg5[%c4, %c0_40, %c32_41] : memref<8x2x64xf32, #tpu.memory_space<vmem>>, vector<1x2x32xf32>
    %183 = vector.shape_cast %182 : vector<1x2x32xf32> to vector<2x32xf32>
    %184 = vector.shape_cast %178 : vector<2x32xf32> to vector<1x2x32xf32>
    tpu.vector_store %arg5[%c4, %c0_40, %c32_41], %184 {strides = array<i32>} : memref<8x2x64xf32, #tpu.memory_space<vmem>>, vector<1x2x32xf32>,
    %185 = vector.extract_strided_slice %5 {offsets = [8, 0], sizes = [2, 128], strides = [1, 1]} : vector<16x256xf32> to vector<2x128xf32>
    %186 = vector.extract_strided_slice %5 {offsets = [6, 128], sizes = [2, 128], strides = [1, 1]} : vector<16x256xf32> to vector<2x128xf32>
    %cst_42 = arith.constant dense<0.000000e+00> : vector<2x128xf32>
    %187 = tpu.matmul %160, %6, %cst_42 {dimension_numbers = #tpu.dot_dimension_numbers<[1], [0], [0], [1], [0, 0, 1, 1], [], []>} : vector<2x32xf32>, vector<32x128xf32>, vector<2x128xf32> -> vector<2x128xf32>
    %188 = arith.addf %185, %187 : vector<2x128xf32>
    %189 = vector.extract_strided_slice %188 {offsets = [0, 0], sizes = [2, 96], strides = [1, 1]} : vector<2x128xf32> to vector<2x96xf32>
    %190 = arith.negf %189 : vector<2x96xf32>
    %191 = math.exp %190 : vector<2x96xf32>
    %cst_43 = arith.constant 1.000000e+00 : f32
    %192 = vector.broadcast %cst_43 : f32 to vector<2x96xf32>
    %193 = arith.addf %192, %191 : vector<2x96xf32>
    %194 = arith.divf %192, %193 : vector<2x96xf32>
    %195 = vector.extract_strided_slice %188 {offsets = [0, 96], sizes = [2, 32], strides = [1, 1]} : vector<2x128xf32> to vector<2x32xf32>
    %196 = math.tanh %195 : vector<2x32xf32>
    %197 = vector.extract_strided_slice %194 {offsets = [0, 0], sizes = [2, 32], strides = [1, 1]} : vector<2x96xf32> to vector<2x32xf32>
    %198 = vector.extract_strided_slice %194 {offsets = [0, 32], sizes = [2, 32], strides = [1, 1]} : vector<2x96xf32> to vector<2x32xf32>
    %199 = vector.extract_strided_slice %194 {offsets = [0, 64], sizes = [2, 32], strides = [1, 1]} : vector<2x96xf32> to vector<2x32xf32>
    %200 = arith.mulf %198, %158 : vector<2x32xf32>
    %201 = arith.mulf %197, %196 : vector<2x32xf32>
    %202 = arith.addf %200, %201 : vector<2x32xf32>
    %203 = math.tanh %202 : vector<2x32xf32>
    %204 = arith.mulf %199, %203 : vector<2x32xf32>
    %cst_44 = arith.constant dense<0.000000e+00> : vector<2x128xf32>
    %205 = tpu.matmul %178, %7, %cst_44 {dimension_numbers = #tpu.dot_dimension_numbers<[1], [0], [0], [1], [0, 0, 1, 1], [], []>} : vector<2x32xf32>, vector<32x128xf32>, vector<2x128xf32> -> vector<2x128xf32>
    %206 = arith.addf %186, %205 : vector<2x128xf32>
    %207 = vector.extract_strided_slice %206 {offsets = [0, 0], sizes = [2, 96], strides = [1, 1]} : vector<2x128xf32> to vector<2x96xf32>
    %208 = arith.negf %207 : vector<2x96xf32>
    %209 = math.exp %208 : vector<2x96xf32>
    %cst_45 = arith.constant 1.000000e+00 : f32
    %210 = vector.broadcast %cst_45 : f32 to vector<2x96xf32>
    %211 = arith.addf %210, %209 : vector<2x96xf32>
    %212 = arith.divf %210, %211 : vector<2x96xf32>
    %213 = vector.extract_strided_slice %206 {offsets = [0, 96], sizes = [2, 32], strides = [1, 1]} : vector<2x128xf32> to vector<2x32xf32>
    %214 = math.tanh %213 : vector<2x32xf32>
    %215 = vector.extract_strided_slice %212 {offsets = [0, 0], sizes = [2, 32], strides = [1, 1]} : vector<2x96xf32> to vector<2x32xf32>
    %216 = vector.extract_strided_slice %212 {offsets = [0, 32], sizes = [2, 32], strides = [1, 1]} : vector<2x96xf32> to vector<2x32xf32>
    %217 = vector.extract_strided_slice %212 {offsets = [0, 64], sizes = [2, 32], strides = [1, 1]} : vector<2x96xf32> to vector<2x32xf32>
    %218 = arith.mulf %216, %176 : vector<2x32xf32>
    %219 = arith.mulf %215, %214 : vector<2x32xf32>
    %220 = arith.addf %218, %219 : vector<2x32xf32>
    %221 = math.tanh %220 : vector<2x32xf32>
    %222 = arith.mulf %217, %221 : vector<2x32xf32>
    %c4_46 = arith.constant 4 : index
    %c0_47 = arith.constant 0 : index
    %c0_48 = arith.constant 0 : index
    %223 = vector.load %arg5[%c4_46, %c0_47, %c0_48] : memref<8x2x64xf32, #tpu.memory_space<vmem>>, vector<1x2x32xf32>
    %224 = vector.shape_cast %223 : vector<1x2x32xf32> to vector<2x32xf32>
    %225 = vector.shape_cast %204 : vector<2x32xf32> to vector<1x2x32xf32>
    tpu.vector_store %arg5[%c4_46, %c0_47, %c0_48], %225 {strides = array<i32>} : memref<8x2x64xf32, #tpu.memory_space<vmem>>, vector<1x2x32xf32>,
    %c3_49 = arith.constant 3 : index
    %c0_50 = arith.constant 0 : index
    %c32_51 = arith.constant 32 : index
    %226 = vector.load %arg5[%c3_49, %c0_50, %c32_51] : memref<8x2x64xf32, #tpu.memory_space<vmem>>, vector<1x2x32xf32>
    %227 = vector.shape_cast %226 : vector<1x2x32xf32> to vector<2x32xf32>
    %228 = vector.shape_cast %222 : vector<2x32xf32> to vector<1x2x32xf32>
    tpu.vector_store %arg5[%c3_49, %c0_50, %c32_51], %228 {strides = array<i32>} : memref<8x2x64xf32, #tpu.memory_space<vmem>>, vector<1x2x32xf32>,
    %229 = vector.extract_strided_slice %5 {offsets = [10, 0], sizes = [2, 128], strides = [1, 1]} : vector<16x256xf32> to vector<2x128xf32>
    %230 = vector.extract_strided_slice %5 {offsets = [4, 128], sizes = [2, 128], strides = [1, 1]} : vector<16x256xf32> to vector<2x128xf32>
    %cst_52 = arith.constant dense<0.000000e+00> : vector<2x128xf32>
    %231 = tpu.matmul %204, %6, %cst_52 {dimension_numbers = #tpu.dot_dimension_numbers<[1], [0], [0], [1], [0, 0, 1, 1], [], []>} : vector<2x32xf32>, vector<32x128xf32>, vector<2x128xf32> -> vector<2x128xf32>
    %232 = arith.addf %229, %231 : vector<2x128xf32>
    %233 = vector.extract_strided_slice %232 {offsets = [0, 0], sizes = [2, 96], strides = [1, 1]} : vector<2x128xf32> to vector<2x96xf32>
    %234 = arith.negf %233 : vector<2x96xf32>
    %235 = math.exp %234 : vector<2x96xf32>
    %cst_53 = arith.constant 1.000000e+00 : f32
    %236 = vector.broadcast %cst_53 : f32 to vector<2x96xf32>
    %237 = arith.addf %236, %235 : vector<2x96xf32>
    %238 = arith.divf %236, %237 : vector<2x96xf32>
    %239 = vector.extract_strided_slice %232 {offsets = [0, 96], sizes = [2, 32], strides = [1, 1]} : vector<2x128xf32> to vector<2x32xf32>
    %240 = math.tanh %239 : vector<2x32xf32>
    %241 = vector.extract_strided_slice %238 {offsets = [0, 0], sizes = [2, 32], strides = [1, 1]} : vector<2x96xf32> to vector<2x32xf32>
    %242 = vector.extract_strided_slice %238 {offsets = [0, 32], sizes = [2, 32], strides = [1, 1]} : vector<2x96xf32> to vector<2x32xf32>
    %243 = vector.extract_strided_slice %238 {offsets = [0, 64], sizes = [2, 32], strides = [1, 1]} : vector<2x96xf32> to vector<2x32xf32>
    %244 = arith.mulf %242, %202 : vector<2x32xf32>
    %245 = arith.mulf %241, %240 : vector<2x32xf32>
    %246 = arith.addf %244, %245 : vector<2x32xf32>
    %247 = math.tanh %246 : vector<2x32xf32>
    %248 = arith.mulf %243, %247 : vector<2x32xf32>
    %cst_54 = arith.constant dense<0.000000e+00> : vector<2x128xf32>
    %249 = tpu.matmul %222, %7, %cst_54 {dimension_numbers = #tpu.dot_dimension_numbers<[1], [0], [0], [1], [0, 0, 1, 1], [], []>} : vector<2x32xf32>, vector<32x128xf32>, vector<2x128xf32> -> vector<2x128xf32>
    %250 = arith.addf %230, %249 : vector<2x128xf32>
    %251 = vector.extract_strided_slice %250 {offsets = [0, 0], sizes = [2, 96], strides = [1, 1]} : vector<2x128xf32> to vector<2x96xf32>
    %252 = arith.negf %251 : vector<2x96xf32>
    %253 = math.exp %252 : vector<2x96xf32>
    %cst_55 = arith.constant 1.000000e+00 : f32
    %254 = vector.broadcast %cst_55 : f32 to vector<2x96xf32>
    %255 = arith.addf %254, %253 : vector<2x96xf32>
    %256 = arith.divf %254, %255 : vector<2x96xf32>
    %257 = vector.extract_strided_slice %250 {offsets = [0, 96], sizes = [2, 32], strides = [1, 1]} : vector<2x128xf32> to vector<2x32xf32>
    %258 = math.tanh %257 : vector<2x32xf32>
    %259 = vector.extract_strided_slice %256 {offsets = [0, 0], sizes = [2, 32], strides = [1, 1]} : vector<2x96xf32> to vector<2x32xf32>
    %260 = vector.extract_strided_slice %256 {offsets = [0, 32], sizes = [2, 32], strides = [1, 1]} : vector<2x96xf32> to vector<2x32xf32>
    %261 = vector.extract_strided_slice %256 {offsets = [0, 64], sizes = [2, 32], strides = [1, 1]} : vector<2x96xf32> to vector<2x32xf32>
    %262 = arith.mulf %260, %220 : vector<2x32xf32>
    %263 = arith.mulf %259, %258 : vector<2x32xf32>
    %264 = arith.addf %262, %263 : vector<2x32xf32>
    %265 = math.tanh %264 : vector<2x32xf32>
    %266 = arith.mulf %261, %265 : vector<2x32xf32>
    %c5_56 = arith.constant 5 : index
    %c0_57 = arith.constant 0 : index
    %c0_58 = arith.constant 0 : index
    %267 = vector.load %arg5[%c5_56, %c0_57, %c0_58] : memref<8x2x64xf32, #tpu.memory_space<vmem>>, vector<1x2x32xf32>
    %268 = vector.shape_cast %267 : vector<1x2x32xf32> to vector<2x32xf32>
    %269 = vector.shape_cast %248 : vector<2x32xf32> to vector<1x2x32xf32>
    tpu.vector_store %arg5[%c5_56, %c0_57, %c0_58], %269 {strides = array<i32>} : memref<8x2x64xf32, #tpu.memory_space<vmem>>, vector<1x2x32xf32>,
    %c2_59 = arith.constant 2 : index
    %c0_60 = arith.constant 0 : index
    %c32_61 = arith.constant 32 : index
    %270 = vector.load %arg5[%c2_59, %c0_60, %c32_61] : memref<8x2x64xf32, #tpu.memory_space<vmem>>, vector<1x2x32xf32>
    %271 = vector.shape_cast %270 : vector<1x2x32xf32> to vector<2x32xf32>
    %272 = vector.shape_cast %266 : vector<2x32xf32> to vector<1x2x32xf32>
    tpu.vector_store %arg5[%c2_59, %c0_60, %c32_61], %272 {strides = array<i32>} : memref<8x2x64xf32, #tpu.memory_space<vmem>>, vector<1x2x32xf32>,
    %273 = vector.extract_strided_slice %5 {offsets = [12, 0], sizes = [2, 128], strides = [1, 1]} : vector<16x256xf32> to vector<2x128xf32>
    %274 = vector.extract_strided_slice %5 {offsets = [2, 128], sizes = [2, 128], strides = [1, 1]} : vector<16x256xf32> to vector<2x128xf32>
    %cst_62 = arith.constant dense<0.000000e+00> : vector<2x128xf32>
    %275 = tpu.matmul %248, %6, %cst_62 {dimension_numbers = #tpu.dot_dimension_numbers<[1], [0], [0], [1], [0, 0, 1, 1], [], []>} : vector<2x32xf32>, vector<32x128xf32>, vector<2x128xf32> -> vector<2x128xf32>
    %276 = arith.addf %273, %275 : vector<2x128xf32>
    %277 = vector.extract_strided_slice %276 {offsets = [0, 0], sizes = [2, 96], strides = [1, 1]} : vector<2x128xf32> to vector<2x96xf32>
    %278 = arith.negf %277 : vector<2x96xf32>
    %279 = math.exp %278 : vector<2x96xf32>
    %cst_63 = arith.constant 1.000000e+00 : f32
    %280 = vector.broadcast %cst_63 : f32 to vector<2x96xf32>
    %281 = arith.addf %280, %279 : vector<2x96xf32>
    %282 = arith.divf %280, %281 : vector<2x96xf32>
    %283 = vector.extract_strided_slice %276 {offsets = [0, 96], sizes = [2, 32], strides = [1, 1]} : vector<2x128xf32> to vector<2x32xf32>
    %284 = math.tanh %283 : vector<2x32xf32>
    %285 = vector.extract_strided_slice %282 {offsets = [0, 0], sizes = [2, 32], strides = [1, 1]} : vector<2x96xf32> to vector<2x32xf32>
    %286 = vector.extract_strided_slice %282 {offsets = [0, 32], sizes = [2, 32], strides = [1, 1]} : vector<2x96xf32> to vector<2x32xf32>
    %287 = vector.extract_strided_slice %282 {offsets = [0, 64], sizes = [2, 32], strides = [1, 1]} : vector<2x96xf32> to vector<2x32xf32>
    %288 = arith.mulf %286, %246 : vector<2x32xf32>
    %289 = arith.mulf %285, %284 : vector<2x32xf32>
    %290 = arith.addf %288, %289 : vector<2x32xf32>
    %291 = math.tanh %290 : vector<2x32xf32>
    %292 = arith.mulf %287, %291 : vector<2x32xf32>
    %cst_64 = arith.constant dense<0.000000e+00> : vector<2x128xf32>
    %293 = tpu.matmul %266, %7, %cst_64 {dimension_numbers = #tpu.dot_dimension_numbers<[1], [0], [0], [1], [0, 0, 1, 1], [], []>} : vector<2x32xf32>, vector<32x128xf32>, vector<2x128xf32> -> vector<2x128xf32>
    %294 = arith.addf %274, %293 : vector<2x128xf32>
    %295 = vector.extract_strided_slice %294 {offsets = [0, 0], sizes = [2, 96], strides = [1, 1]} : vector<2x128xf32> to vector<2x96xf32>
    %296 = arith.negf %295 : vector<2x96xf32>
    %297 = math.exp %296 : vector<2x96xf32>
    %cst_65 = arith.constant 1.000000e+00 : f32
    %298 = vector.broadcast %cst_65 : f32 to vector<2x96xf32>
    %299 = arith.addf %298, %297 : vector<2x96xf32>
    %300 = arith.divf %298, %299 : vector<2x96xf32>
    %301 = vector.extract_strided_slice %294 {offsets = [0, 96], sizes = [2, 32], strides = [1, 1]} : vector<2x128xf32> to vector<2x32xf32>
    %302 = math.tanh %301 : vector<2x32xf32>
    %303 = vector.extract_strided_slice %300 {offsets = [0, 0], sizes = [2, 32], strides = [1, 1]} : vector<2x96xf32> to vector<2x32xf32>
    %304 = vector.extract_strided_slice %300 {offsets = [0, 32], sizes = [2, 32], strides = [1, 1]} : vector<2x96xf32> to vector<2x32xf32>
    %305 = vector.extract_strided_slice %300 {offsets = [0, 64], sizes = [2, 32], strides = [1, 1]} : vector<2x96xf32> to vector<2x32xf32>
    %306 = arith.mulf %304, %264 : vector<2x32xf32>
    %307 = arith.mulf %303, %302 : vector<2x32xf32>
    %308 = arith.addf %306, %307 : vector<2x32xf32>
    %309 = math.tanh %308 : vector<2x32xf32>
    %310 = arith.mulf %305, %309 : vector<2x32xf32>
    %c6_66 = arith.constant 6 : index
    %c0_67 = arith.constant 0 : index
    %c0_68 = arith.constant 0 : index
    %311 = vector.load %arg5[%c6_66, %c0_67, %c0_68] : memref<8x2x64xf32, #tpu.memory_space<vmem>>, vector<1x2x32xf32>
    %312 = vector.shape_cast %311 : vector<1x2x32xf32> to vector<2x32xf32>
    %313 = vector.shape_cast %292 : vector<2x32xf32> to vector<1x2x32xf32>
    tpu.vector_store %arg5[%c6_66, %c0_67, %c0_68], %313 {strides = array<i32>} : memref<8x2x64xf32, #tpu.memory_space<vmem>>, vector<1x2x32xf32>,
    %c1_69 = arith.constant 1 : index
    %c0_70 = arith.constant 0 : index
    %c32_71 = arith.constant 32 : index
    %314 = vector.load %arg5[%c1_69, %c0_70, %c32_71] : memref<8x2x64xf32, #tpu.memory_space<vmem>>, vector<1x2x32xf32>
    %315 = vector.shape_cast %314 : vector<1x2x32xf32> to vector<2x32xf32>
    %316 = vector.shape_cast %310 : vector<2x32xf32> to vector<1x2x32xf32>
    tpu.vector_store %arg5[%c1_69, %c0_70, %c32_71], %316 {strides = array<i32>} : memref<8x2x64xf32, #tpu.memory_space<vmem>>, vector<1x2x32xf32>,
    %317 = vector.extract_strided_slice %5 {offsets = [14, 0], sizes = [2, 128], strides = [1, 1]} : vector<16x256xf32> to vector<2x128xf32>
    %318 = vector.extract_strided_slice %5 {offsets = [0, 128], sizes = [2, 128], strides = [1, 1]} : vector<16x256xf32> to vector<2x128xf32>
    %cst_72 = arith.constant dense<0.000000e+00> : vector<2x128xf32>
    %319 = tpu.matmul %292, %6, %cst_72 {dimension_numbers = #tpu.dot_dimension_numbers<[1], [0], [0], [1], [0, 0, 1, 1], [], []>} : vector<2x32xf32>, vector<32x128xf32>, vector<2x128xf32> -> vector<2x128xf32>
    %320 = arith.addf %317, %319 : vector<2x128xf32>
    %321 = vector.extract_strided_slice %320 {offsets = [0, 0], sizes = [2, 96], strides = [1, 1]} : vector<2x128xf32> to vector<2x96xf32>
    %322 = arith.negf %321 : vector<2x96xf32>
    %323 = math.exp %322 : vector<2x96xf32>
    %cst_73 = arith.constant 1.000000e+00 : f32
    %324 = vector.broadcast %cst_73 : f32 to vector<2x96xf32>
    %325 = arith.addf %324, %323 : vector<2x96xf32>
    %326 = arith.divf %324, %325 : vector<2x96xf32>
    %327 = vector.extract_strided_slice %320 {offsets = [0, 96], sizes = [2, 32], strides = [1, 1]} : vector<2x128xf32> to vector<2x32xf32>
    %328 = math.tanh %327 : vector<2x32xf32>
    %329 = vector.extract_strided_slice %326 {offsets = [0, 0], sizes = [2, 32], strides = [1, 1]} : vector<2x96xf32> to vector<2x32xf32>
    %330 = vector.extract_strided_slice %326 {offsets = [0, 32], sizes = [2, 32], strides = [1, 1]} : vector<2x96xf32> to vector<2x32xf32>
    %331 = vector.extract_strided_slice %326 {offsets = [0, 64], sizes = [2, 32], strides = [1, 1]} : vector<2x96xf32> to vector<2x32xf32>
    %332 = arith.mulf %330, %290 : vector<2x32xf32>
    %333 = arith.mulf %329, %328 : vector<2x32xf32>
    %334 = arith.addf %332, %333 : vector<2x32xf32>
    %335 = math.tanh %334 : vector<2x32xf32>
    %336 = arith.mulf %331, %335 : vector<2x32xf32>
    %cst_74 = arith.constant dense<0.000000e+00> : vector<2x128xf32>
    %337 = tpu.matmul %310, %7, %cst_74 {dimension_numbers = #tpu.dot_dimension_numbers<[1], [0], [0], [1], [0, 0, 1, 1], [], []>} : vector<2x32xf32>, vector<32x128xf32>, vector<2x128xf32> -> vector<2x128xf32>
    %338 = arith.addf %318, %337 : vector<2x128xf32>
    %339 = vector.extract_strided_slice %338 {offsets = [0, 0], sizes = [2, 96], strides = [1, 1]} : vector<2x128xf32> to vector<2x96xf32>
    %340 = arith.negf %339 : vector<2x96xf32>
    %341 = math.exp %340 : vector<2x96xf32>
    %cst_75 = arith.constant 1.000000e+00 : f32
    %342 = vector.broadcast %cst_75 : f32 to vector<2x96xf32>
    %343 = arith.addf %342, %341 : vector<2x96xf32>
    %344 = arith.divf %342, %343 : vector<2x96xf32>
    %345 = vector.extract_strided_slice %338 {offsets = [0, 96], sizes = [2, 32], strides = [1, 1]} : vector<2x128xf32> to vector<2x32xf32>
    %346 = math.tanh %345 : vector<2x32xf32>
    %347 = vector.extract_strided_slice %344 {offsets = [0, 0], sizes = [2, 32], strides = [1, 1]} : vector<2x96xf32> to vector<2x32xf32>
    %348 = vector.extract_strided_slice %344 {offsets = [0, 32], sizes = [2, 32], strides = [1, 1]} : vector<2x96xf32> to vector<2x32xf32>
    %349 = vector.extract_strided_slice %344 {offsets = [0, 64], sizes = [2, 32], strides = [1, 1]} : vector<2x96xf32> to vector<2x32xf32>
    %350 = arith.mulf %348, %308 : vector<2x32xf32>
    %351 = arith.mulf %347, %346 : vector<2x32xf32>
    %352 = arith.addf %350, %351 : vector<2x32xf32>
    %353 = math.tanh %352 : vector<2x32xf32>
    %354 = arith.mulf %349, %353 : vector<2x32xf32>
    %c7_76 = arith.constant 7 : index
    %c0_77 = arith.constant 0 : index
    %c0_78 = arith.constant 0 : index
    %355 = vector.load %arg5[%c7_76, %c0_77, %c0_78] : memref<8x2x64xf32, #tpu.memory_space<vmem>>, vector<1x2x32xf32>
    %356 = vector.shape_cast %355 : vector<1x2x32xf32> to vector<2x32xf32>
    %357 = vector.shape_cast %336 : vector<2x32xf32> to vector<1x2x32xf32>
    tpu.vector_store %arg5[%c7_76, %c0_77, %c0_78], %357 {strides = array<i32>} : memref<8x2x64xf32, #tpu.memory_space<vmem>>, vector<1x2x32xf32>,
    %c0_79 = arith.constant 0 : index
    %c0_80 = arith.constant 0 : index
    %c32_81 = arith.constant 32 : index
    %358 = vector.load %arg5[%c0_79, %c0_80, %c32_81] : memref<8x2x64xf32, #tpu.memory_space<vmem>>, vector<1x2x32xf32>
    %359 = vector.shape_cast %358 : vector<1x2x32xf32> to vector<2x32xf32>
    %360 = vector.shape_cast %354 : vector<2x32xf32> to vector<1x2x32xf32>
    tpu.vector_store %arg5[%c0_79, %c0_80, %c32_81], %360 {strides = array<i32>} : memref<8x2x64xf32, #tpu.memory_space<vmem>>, vector<1x2x32xf32>,
    %c0_82 = arith.constant 0 : index
    %c0_83 = arith.constant 0 : index
    %c0_84 = arith.constant 0 : index
    %361 = vector.load %arg6[%c0_82, %c0_83, %c0_84] : memref<2x2x32xf32, #tpu.memory_space<vmem>>, vector<1x2x32xf32>
    %362 = vector.shape_cast %361 : vector<1x2x32xf32> to vector<2x32xf32>
    %363 = vector.shape_cast %336 : vector<2x32xf32> to vector<1x2x32xf32>
    tpu.vector_store %arg6[%c0_82, %c0_83, %c0_84], %363 {strides = array<i32>} : memref<2x2x32xf32, #tpu.memory_space<vmem>>, vector<1x2x32xf32>,
    %c1_85 = arith.constant 1 : index
    %c0_86 = arith.constant 0 : index
    %c0_87 = arith.constant 0 : index
    %364 = vector.load %arg6[%c1_85, %c0_86, %c0_87] : memref<2x2x32xf32, #tpu.memory_space<vmem>>, vector<1x2x32xf32>
    %365 = vector.shape_cast %364 : vector<1x2x32xf32> to vector<2x32xf32>
    %366 = vector.shape_cast %354 : vector<2x32xf32> to vector<1x2x32xf32>
    tpu.vector_store %arg6[%c1_85, %c0_86, %c0_87], %366 {strides = array<i32>} : memref<2x2x32xf32, #tpu.memory_space<vmem>>, vector<1x2x32xf32>,
    %c0_88 = arith.constant 0 : index
    %c0_89 = arith.constant 0 : index
    %c0_90 = arith.constant 0 : index
    %367 = vector.load %arg7[%c0_88, %c0_89, %c0_90] : memref<2x2x32xf32, #tpu.memory_space<vmem>>, vector<1x2x32xf32>
    %368 = vector.shape_cast %367 : vector<1x2x32xf32> to vector<2x32xf32>
    %369 = vector.shape_cast %334 : vector<2x32xf32> to vector<1x2x32xf32>
    tpu.vector_store %arg7[%c0_88, %c0_89, %c0_90], %369 {strides = array<i32>} : memref<2x2x32xf32, #tpu.memory_space<vmem>>, vector<1x2x32xf32>,
    %c1_91 = arith.constant 1 : index
    %c0_92 = arith.constant 0 : index
    %c0_93 = arith.constant 0 : index
    %370 = vector.load %arg7[%c1_91, %c0_92, %c0_93] : memref<2x2x32xf32, #tpu.memory_space<vmem>>, vector<1x2x32xf32>
    %371 = vector.shape_cast %370 : vector<1x2x32xf32> to vector<2x32xf32>
    %372 = vector.shape_cast %352 : vector<2x32xf32> to vector<1x2x32xf32>
    tpu.vector_store %arg7[%c1_91, %c0_92, %c0_93], %372 {strides = array<i32>} : memref<2x2x32xf32, #tpu.memory_space<vmem>>, vector<1x2x32xf32>,
    return
  }
}

</mosaic_0001>

<llo_original>
// kernel: rnn_encoder.1
$region0: #{rnn_encoder.1}
  #allocation0 [shape = 'u32[]', space=smem, size = 0x4, offset = 0x4, fixed_abs, tag = 'smem constant byte address 0x4 - core index']
  #allocation1 [shape = 'u32[144,128]{1,0:T(1,128)}', space=vmem, size = 0x12000, scoped, tag = 'internal scratch']
  %s0 = inlined_call_operand.vmem [shape: f32[16,2], index: 0, kind: input, shape index: {}]
  %s1 = inlined_call_operand.vmem [shape: f32[2,256], index: 1, kind: input, shape index: {}]
  %s2 = inlined_call_operand.vmem [shape: f32[1,256], index: 2, kind: input, shape index: {}]
  %s3 = inlined_call_operand.vmem [shape: f32[32,128], index: 3, kind: input, shape index: {}]
  %s4 = inlined_call_operand.hbm [shape: f32[32,128], index: 4, kind: input, shape index: {}]
  %s5 = inlined_call_operand.vmem [shape: f32[8,2,64], index: 5, kind: output, shape index: {0}]
  %s6 = inlined_call_operand.hbm [shape: f32[2,2,32], index: 6, kind: output, shape index: {1}]
  %s7 = inlined_call_operand.hbm [shape: f32[2,2,32], index: 7, kind: output, shape index: {2}]
  %8 = xla_tuple %s5, %s6, %s7
  %s9 = sld [smem:[#allocation0]]
  $region50: #{rnn_encoder.1} parent=0
    _
  %s11 = ssub.s32 1, %s9
  %s12 = scalar_select 0, %s11, %s9
  $region1: #{rnn_encoder.1} parent=0
    #allocation2 [shape = 'u8[16384]{0}', space=vmem, size = 0x4000, scoped, tag = 'input window, operand 4, single buffered']
    #allocation3 [shape = 's32[1]{0}', space=sflag, size = 0x4, scoped, tag = 'scoped memory for rnn_encoder.1']
    #allocation4 [shape = 's32[1]{0}', space=sflag, size = 0x4, scoped, tag = 'scoped memory for rnn_encoder.1']
    #allocation5 [shape = 'u8[2048]{0}', space=vmem, size = 0x800, scoped, tag = 'output window, operand 1, single buffered']
    #allocation6 [shape = 'u8[2048]{0}', space=vmem, size = 0x800, scoped, tag = 'output window, operand 2, single buffered']
    #allocation7 [shape = 's32[1]{0}', space=sflag, size = 0x4, scoped, tag = 'scoped memory for rnn_encoder.1']
    %13 = vsyncpa [#allocation3], 0
    %14 = vsyncpa [#allocation4], 0
    %15 = vsyncpa [#allocation7], 0
    // Predicated region
    $region2: #{rnn_encoder.1} parent=1 // pred_check
      _
    $region3: #{rnn_encoder.1} parent=1 // pred_check_branch
      %17 = sbr.rel (0) target = $region5
    $region4: #{rnn_encoder.1} parent=1 // pred_region
      _
    $region5: #{rnn_encoder.1} parent=1 // pred_fallthru
      _
    // Predicated region
    $region6: #{rnn_encoder.1} parent=1 // pred_check
      _
    $region7: #{rnn_encoder.1} parent=1 // pred_check_branch
      %19 = sbr.rel (0) target = $region9
    $region8: #{rnn_encoder.1} parent=1 // pred_region
      _
    $region9: #{rnn_encoder.1} parent=1 // pred_fallthru
      _
    // Predicated region
    $region10: #{rnn_encoder.1} parent=1 // pred_check
      _
    $region11: #{rnn_encoder.1} parent=1 // pred_check_branch
      %21 = sbr.rel (0) target = $region13
    $region12: #{rnn_encoder.1} parent=1 // pred_region
      _
    $region13: #{rnn_encoder.1} parent=1 // pred_fallthru
      _
    // Predicated region
    $region14: #{rnn_encoder.1} parent=1 // pred_check
      _
    $region15: #{rnn_encoder.1} parent=1 // pred_check_branch
      %23 = sbr.rel (0) target = $region17
    $region16: #{rnn_encoder.1} parent=1 // pred_region
      _
    $region17: #{rnn_encoder.1} parent=1 // pred_fallthru
      _
    // Predicated region
    $region18: #{rnn_encoder.1} parent=1 // pred_check
      _
    $region19: #{rnn_encoder.1} parent=1 // pred_check_branch
      %25 = sbr.rel (0) target = $region21
    $region20: #{rnn_encoder.1} parent=1 // pred_region
      %s27 = ssub.s32 512, 512
      %28 = vsyncadd [#allocation3], %s27
      %s29 = sshll.u32 [#allocation2], 4
      %s30 = int_to_ptr.vmem [resolvable:$true] %s29
      %35 = dma.hbm_to_vmem [thread:$0]  %s4, 512, %s30, [#allocation3], 128, 128, 8
    $region21: #{rnn_encoder.1} parent=1 // pred_fallthru
      _
    // Predicated region
    $region22: #{rnn_encoder.1} parent=1 // pred_check
      _
    $region23: #{rnn_encoder.1} parent=1 // pred_check_branch
      %37 = sbr.rel (0) target = $region25
    $region24: #{rnn_encoder.1} parent=1 // pred_region
      %38 = dma.done [#allocation3], 512
    $region25: #{rnn_encoder.1} parent=1 // pred_fallthru
      _
    %v39 = vld [vmem:[%s0] sm:$0xff]
    %v40 = vld [vmem:[%s0 + $0x8] sm:$0xff]
    %v41 = vld [vmem:[%s1] sm:$0xf]
    %v42 = vld [vmem:[%s2] sm:$0x3]
    %v44 = vlaneseq
    %v45 = vshrl.u32 %v44, 7
    %v46 = vsub.s32 0, %v45
    %v47 = vrot.slane %v42, %v46
    %v48 = vlaneseq
    %v49 = vshrl.u32 %v48, 7
    %v50 = vsub.s32 1, %v49
    %v51 = vrot.slane %v42, %v50
    %v56 = vunpack.c.l.s4 1983009808
    %v57 = vunpack.c.0.s8 %v56
    %v58 = vlaneseq
    %v59 = vshrl.u32 %v58, 7
    %v60 = vsub.s32 %v57, %v59
    %v61 = vrot.slane %v41, %v60
    %v62 = vcombine.high %v61, %v61
    %vm63 = vcmask 15360
    %v65 = vsel %vm63, %v39, 0
    %v68 = vsel %vm63, %v40, 0
    %vm70 = vcmask 1041408
    %v71 = vsel %vm70, %v61, 0
    %v73 = vsel %vm70, %v62, 0
    %75 = vmatprep.subr.mxu0 %v73
    %76 = vmatpush1.msra.mxu0 %v71
    %77 = vmatprep.subr.mxu0 0.0
    %78 = vmatpush1.msra.mxu0 0.0
    %79 = vmatprep.subr.mxu0 0.0
    %80 = vmatpush1.msra.mxu0 0.0
    %81 = vmatprep.subr.mxu0 0.0
    %82 = vmatpush1.msra.mxu0 0.0
    %83 = vmatprep.subr.mxu0 0.0
    %84 = vmatpush1.msra.mxu0 0.0
    %85 = vmatprep.subr.mxu0 0.0
    %86 = vmatpush1.msra.mxu0 0.0
    %87 = vmatprep.subr.mxu0 0.0
    %88 = vmatpush1.msra.mxu0 0.0
    %89 = vmatprep.subr.mxu0 0.0
    %90 = vmatpush1.msra.mxu0 0.0
    %91 = vmatprep.subr.mxu0 0.0
    %92 = vmatpush1.msra.mxu0 0.0
    %93 = vmatprep.subr.mxu0 0.0
    %94 = vmatpush1.msra.mxu0 0.0
    %95 = vmatprep.subr.mxu0 0.0
    %96 = vmatpush1.msra.mxu0 0.0
    %97 = vmatprep.subr.mxu0 0.0
    %98 = vmatpush1.msra.mxu0 0.0
    %99 = vmatprep.subr.mxu0 0.0
    %100 = vmatpush1.msra.mxu0 0.0
    %101 = vmatprep.subr.mxu0 0.0
    %102 = vmatpush1.msra.mxu0 0.0
    %103 = vmatprep.subr.mxu0 0.0
    %104 = vmatpush1.msra.mxu0 0.0
    %105 = vmatprep.subr.mxu0 0.0
    %106 = vmatpush1.msra.mxu0 0.0
    %107 = vmatprep.subr.mxu0 0.0
    %108 = vmatpush1.msra.mxu0 0.0
    %109 = vmatprep.subr.mxu0 0.0
    %110 = vmatpush1.msra.mxu0 0.0
    %111 = vmatprep.subr.mxu0 0.0
    %112 = vmatpush1.msra.mxu0 0.0
    %113 = vmatprep.subr.mxu0 0.0
    %114 = vmatpush1.msra.mxu0 0.0
    %115 = vmatprep.subr.mxu0 0.0
    %116 = vmatpush1.msra.mxu0 0.0
    %117 = vmatprep.subr.mxu0 0.0
    %118 = vmatpush1.msra.mxu0 0.0
    %119 = vmatprep.subr.mxu0 0.0
    %120 = vmatpush1.msra.mxu0 0.0
    %121 = vmatprep.subr.mxu0 0.0
    %122 = vmatpush1.msra.mxu0 0.0
    %123 = vmatprep.subr.mxu0 0.0
    %124 = vmatpush1.msra.mxu0 0.0
    %125 = vmatprep.subr.mxu0 0.0
    %126 = vmatpush1.msra.mxu0 0.0
    %127 = vmatprep.subr.mxu0 0.0
    %128 = vmatpush1.msra.mxu0 0.0
    %129 = vmatprep.subr.mxu0 0.0
    %130 = vmatpush1.msra.mxu0 0.0
    %131 = vmatprep.subr.mxu0 0.0
    %132 = vmatpush1.msra.mxu0 0.0
    %133 = vmatprep.subr.mxu0 0.0
    %134 = vmatpush1.msra.mxu0 0.0
    %135 = vmatprep.subr.mxu0 0.0
    %136 = vmatpush1.msra.mxu0 0.0
    %137 = vmatprep.subr.mxu0 0.0
    %138 = vmatpush1.msra.mxu0 0.0
    %139 = vmatprep.mubr.f32.mxu0 0.0
    %140 = vmatmul.mubr.f32.gmra.mrb[0].mxu0 %v65
    %v141 = vpop.f32.mrb[0].mxu0
    %v142 = vadd.f32 %v47, %v141
    %v143 = vpop.f32.mrb[0].mxu0
    %v144 = vadd.f32 %v51, %v143
    %145 = vmatprep.mubr.f32.mxu0 0.0
    %146 = vmatmul.mubr.f32.gmra.mrb[0].mxu0 %v68
    %v147 = vpop.f32.mrb[0].mxu0
    %v148 = vadd.f32 %v47, %v147
    %v149 = vpop.f32.mrb[0].mxu0
    %v150 = vadd.f32 %v51, %v149
    %151 = vdwg.mxu0
    %v152 = vld [vmem:[%s3] sm:$0xff]
    %v153 = vld [vmem:[%s3 + $0x8] sm:$0xff]
    %v154 = vld [vmem:[%s3 + $0x10] sm:$0xff]
    %v155 = vld [vmem:[%s3 + $0x18] sm:$0xff]
    %v156 = vld [vmem:[#allocation2] sm:$0xff]
    %v157 = vld [vmem:[#allocation2 + $0x8] sm:$0xff]
    %v158 = vld [vmem:[#allocation2 + $0x10] sm:$0xff]
    %v159 = vld [vmem:[#allocation2 + $0x18] sm:$0xff]
    %vm160 = vcmask 261120
    %v162 = vsel %vm160, 0.0, 0
    %164 = vmatprep.subr.mxu0 0.0
    %165 = vmatpush1.msra.mxu0 %v152
    %166 = vmatprep.subr.mxu0 0.0
    %167 = vmatpush1.msra.mxu0 %v153
    %168 = vmatprep.subr.mxu0 0.0
    %169 = vmatpush1.msra.mxu0 %v154
    %170 = vmatprep.subr.mxu0 0.0
    %171 = vmatpush1.msra.mxu0 %v155
    %172 = vmatprep.subr.mxu0 0.0
    %173 = vmatpush1.msra.mxu0 0.0
    %174 = vmatprep.subr.mxu0 0.0
    %175 = vmatpush1.msra.mxu0 0.0
    %176 = vmatprep.subr.mxu0 0.0
    %177 = vmatpush1.msra.mxu0 0.0
    %178 = vmatprep.subr.mxu0 0.0
    %179 = vmatpush1.msra.mxu0 0.0
    %180 = vmatprep.subr.mxu0 0.0
    %181 = vmatpush1.msra.mxu0 0.0
    %182 = vmatprep.subr.mxu0 0.0
    %183 = vmatpush1.msra.mxu0 0.0
    %184 = vmatprep.subr.mxu0 0.0
    %185 = vmatpush1.msra.mxu0 0.0
    %186 = vmatprep.subr.mxu0 0.0
    %187 = vmatpush1.msra.mxu0 0.0
    %188 = vmatprep.subr.mxu0 0.0
    %189 = vmatpush1.msra.mxu0 0.0
    %190 = vmatprep.subr.mxu0 0.0
    %191 = vmatpush1.msra.mxu0 0.0
    %192 = vmatprep.subr.mxu0 0.0
    %193 = vmatpush1.msra.mxu0 0.0
    %194 = vmatprep.subr.mxu0 0.0
    %195 = vmatpush1.msra.mxu0 0.0
    %196 = vmatprep.subr.mxu0 0.0
    %197 = vmatpush1.msra.mxu0 0.0
    %198 = vmatprep.subr.mxu0 0.0
    %199 = vmatpush1.msra.mxu0 0.0
    %200 = vmatprep.subr.mxu0 0.0
    %201 = vmatpush1.msra.mxu0 0.0
    %202 = vmatprep.subr.mxu0 0.0
    %203 = vmatpush1.msra.mxu0 0.0
    %204 = vmatprep.subr.mxu0 0.0
    %205 = vmatpush1.msra.mxu0 0.0
    %206 = vmatprep.subr.mxu0 0.0
    %207 = vmatpush1.msra.mxu0 0.0
    %208 = vmatprep.subr.mxu0 0.0
    %209 = vmatpush1.msra.mxu0 0.0
    %210 = vmatprep.subr.mxu0 0.0
    %211 = vmatpush1.msra.mxu0 0.0
    %212 = vmatprep.subr.mxu0 0.0
    %213 = vmatpush1.msra.mxu0 0.0
    %214 = vmatprep.subr.mxu0 0.0
    %215 = vmatpush1.msra.mxu0 0.0
    %216 = vmatprep.subr.mxu0 0.0
    %217 = vmatpush1.msra.mxu0 0.0
    %218 = vmatprep.subr.mxu0 0.0
    %219 = vmatpush1.msra.mxu0 0.0
    %220 = vmatprep.subr.mxu0 0.0
    %221 = vmatpush1.msra.mxu0 0.0
    %222 = vmatprep.subr.mxu0 0.0
    %223 = vmatpush1.msra.mxu0 0.0
    %224 = vmatprep.subr.mxu0 0.0
    %225 = vmatpush1.msra.mxu0 0.0
    %226 = vmatprep.subr.mxu0 0.0
    %227 = vmatpush1.msra.mxu0 0.0
    %228 = vmatprep.mubr.f32.mxu0 0.0
    %229 = vmatmul.mubr.f32.gmra.mrb[0].mxu0 %v162
    %v230 = vpop.f32.mrb[0].mxu0
    %v231 = vadd.f32 0.0, %v230
    %v232 = vpop.f32.mrb[0].mxu0
    %233 = vdwg.mxu0
    %v234 = vadd.f32 %v142, %v231
    %v235 = vxor.u32 %v234, 2147483648
    %v236 = vmul.f32 %v235, 1.442695
    %v237 = vpow.pop %v236
    %v238 = vadd.f32 %v237, 1.0
    %v239 = vrcp.pop %v238
    %v240 = vmul.f32 1.0, %v239
    %v241 = vtanh.pop %v234
    %v242 = vmul.f32 %v240, 0.0
    %244 = vrot.lane.b32.xlu0 %v241, 32
    %v245 = vpop.permute.xlu0 %244
    %v247 = vmul.f32 %v240, %v245
    %249 = vrot.lane.b32.xlu0 %v247, 32
    %v250 = vpop.permute.xlu0 %249
    %v252 = vadd.f32 %v242, %v250
    %v253 = vtanh.pop %v252
    %255 = vrot.lane.b32.xlu0 %v253, 32
    %v256 = vpop.permute.xlu0 %255
    %v258 = vmul.f32 %v240, %v256
    %259 = vmatprep.subr.mxu0 0.0
    %260 = vmatpush1.msra.mxu0 %v156
    %261 = vmatprep.subr.mxu0 0.0
    %262 = vmatpush1.msra.mxu0 %v157
    %263 = vmatprep.subr.mxu0 0.0
    %264 = vmatpush1.msra.mxu0 %v158
    %265 = vmatprep.subr.mxu0 0.0
    %266 = vmatpush1.msra.mxu0 %v159
    %267 = vmatprep.subr.mxu0 0.0
    %268 = vmatpush1.msra.mxu0 0.0
    %269 = vmatprep.subr.mxu0 0.0
    %270 = vmatpush1.msra.mxu0 0.0
    %271 = vmatprep.subr.mxu0 0.0
    %272 = vmatpush1.msra.mxu0 0.0
    %273 = vmatprep.subr.mxu0 0.0
    %274 = vmatpush1.msra.mxu0 0.0
    %275 = vmatprep.subr.mxu0 0.0
    %276 = vmatpush1.msra.mxu0 0.0
    %277 = vmatprep.subr.mxu0 0.0
    %278 = vmatpush1.msra.mxu0 0.0
    %279 = vmatprep.subr.mxu0 0.0
    %280 = vmatpush1.msra.mxu0 0.0
    %281 = vmatprep.subr.mxu0 0.0
    %282 = vmatpush1.msra.mxu0 0.0
    %283 = vmatprep.subr.mxu0 0.0
    %284 = vmatpush1.msra.mxu0 0.0
    %285 = vmatprep.subr.mxu0 0.0
    %286 = vmatpush1.msra.mxu0 0.0
    %287 = vmatprep.subr.mxu0 0.0
    %288 = vmatpush1.msra.mxu0 0.0
    %289 = vmatprep.subr.mxu0 0.0
    %290 = vmatpush1.msra.mxu0 0.0
    %291 = vmatprep.subr.mxu0 0.0
    %292 = vmatpush1.msra.mxu0 0.0
    %293 = vmatprep.subr.mxu0 0.0
    %294 = vmatpush1.msra.mxu0 0.0
    %295 = vmatprep.subr.mxu0 0.0
    %296 = vmatpush1.msra.mxu0 0.0
    %297 = vmatprep.subr.mxu0 0.0
    %298 = vmatpush1.msra.mxu0 0.0
    %299 = vmatprep.subr.mxu0 0.0
    %300 = vmatpush1.msra.mxu0 0.0
    %301 = vmatprep.subr.mxu0 0.0
    %302 = vmatpush1.msra.mxu0 0.0
    %303 = vmatprep.subr.mxu0 0.0
    %304 = vmatpush1.msra.mxu0 0.0
    %305 = vmatprep.subr.mxu0 0.0
    %306 = vmatpush1.msra.mxu0 0.0
    %307 = vmatprep.subr.mxu0 0.0
    %308 = vmatpush1.msra.mxu0 0.0
    %309 = vmatprep.subr.mxu0 0.0
    %310 = vmatpush1.msra.mxu0 0.0
    %311 = vmatprep.subr.mxu0 0.0
    %312 = vmatpush1.msra.mxu0 0.0
    %313 = vmatprep.subr.mxu0 0.0
    %314 = vmatpush1.msra.mxu0 0.0
    %315 = vmatprep.subr.mxu0 0.0
    %316 = vmatpush1.msra.mxu0 0.0
    %317 = vmatprep.subr.mxu0 0.0
    %318 = vmatpush1.msra.mxu0 0.0
    %319 = vmatprep.subr.mxu0 0.0
    %320 = vmatpush1.msra.mxu0 0.0
    %321 = vmatprep.subr.mxu0 0.0
    %322 = vmatpush1.msra.mxu0 0.0
    %323 = vmatprep.mubr.f32.mxu0 0.0
    %324 = vmatmul.mubr.f32.gmra.mrb[0].mxu0 %v162
    %v325 = vpop.f32.mrb[0].mxu0
    %v326 = vadd.f32 0.0, %v325
    %v327 = vpop.f32.mrb[0].mxu0
    %328 = vdwg.mxu0
    %v330 = vrot.slane %v326, 2
    %v332 = vadd.f32 %v150, %v330
    %v333 = vxor.u32 %v332, 2147483648
    %v334 = vmul.f32 %v333, 1.442695
    %v335 = vpow.pop %v334
    %v336 = vadd.f32 %v335, 1.0
    %v337 = vrcp.pop %v336
    %v338 = vmul.f32 1.0, %v337
    %v339 = vtanh.pop %v332
    %v340 = vmul.f32 %v338, 0.0
    %342 = vrot.lane.b32.xlu0 %v339, 32
    %v343 = vpop.permute.xlu0 %342
    %v345 = vmul.f32 %v338, %v343
    %347 = vrot.lane.b32.xlu0 %v345, 32
    %v348 = vpop.permute.xlu0 %347
    %v350 = vadd.f32 %v340, %v348
    %v351 = vtanh.pop %v350
    %353 = vrot.lane.b32.xlu0 %v351, 32
    %v354 = vpop.permute.xlu0 %353
    %v356 = vmul.f32 %v338, %v354
    %358 = vrot.lane.b32.xlu0 %v258, 64
    %v359 = vpop.permute.xlu0 %358
    %vm361 = vcmask 254976
    %362 = vst.msk [vmem:[%s5] sm:$0x3] %vm361, %v359
    %364 = vrot.lane.b32.xlu0 %v356, 96
    %v365 = vpop.permute.xlu0 %364
    %s367 = scalar_lea.vmem %s5, 14
    %vm368 = vcmask 523526
    %369 = vst.msk [vmem:[%s367 - $0x6] sm:$0xc0] %vm368, %v365
    %v370 = vsel %vm160, %v359, 0
    %372 = vmatprep.subr.mxu0 0.0
    %373 = vmatpush1.msra.mxu0 %v152
    %374 = vmatprep.subr.mxu0 0.0
    %375 = vmatpush1.msra.mxu0 %v153
    %376 = vmatprep.subr.mxu0 0.0
    %377 = vmatpush1.msra.mxu0 %v154
    %378 = vmatprep.subr.mxu0 0.0
    %379 = vmatpush1.msra.mxu0 %v155
    %380 = vmatprep.subr.mxu0 0.0
    %381 = vmatpush1.msra.mxu0 0.0
    %382 = vmatprep.subr.mxu0 0.0
    %383 = vmatpush1.msra.mxu0 0.0
    %384 = vmatprep.subr.mxu0 0.0
    %385 = vmatpush1.msra.mxu0 0.0
    %386 = vmatprep.subr.mxu0 0.0
    %387 = vmatpush1.msra.mxu0 0.0
    %388 = vmatprep.subr.mxu0 0.0
    %389 = vmatpush1.msra.mxu0 0.0
    %390 = vmatprep.subr.mxu0 0.0
    %391 = vmatpush1.msra.mxu0 0.0
    %392 = vmatprep.subr.mxu0 0.0
    %393 = vmatpush1.msra.mxu0 0.0
    %394 = vmatprep.subr.mxu0 0.0
    %395 = vmatpush1.msra.mxu0 0.0
    %396 = vmatprep.subr.mxu0 0.0
    %397 = vmatpush1.msra.mxu0 0.0
    %398 = vmatprep.subr.mxu0 0.0
    %399 = vmatpush1.msra.mxu0 0.0
    %400 = vmatprep.subr.mxu0 0.0
    %401 = vmatpush1.msra.mxu0 0.0
    %402 = vmatprep.subr.mxu0 0.0
    %403 = vmatpush1.msra.mxu0 0.0
    %404 = vmatprep.subr.mxu0 0.0
    %405 = vmatpush1.msra.mxu0 0.0
    %406 = vmatprep.subr.mxu0 0.0
    %407 = vmatpush1.msra.mxu0 0.0
    %408 = vmatprep.subr.mxu0 0.0
    %409 = vmatpush1.msra.mxu0 0.0
    %410 = vmatprep.subr.mxu0 0.0
    %411 = vmatpush1.msra.mxu0 0.0
    %412 = vmatprep.subr.mxu0 0.0
    %413 = vmatpush1.msra.mxu0 0.0
    %414 = vmatprep.subr.mxu0 0.0
    %415 = vmatpush1.msra.mxu0 0.0
    %416 = vmatprep.subr.mxu0 0.0
    %417 = vmatpush1.msra.mxu0 0.0
    %418 = vmatprep.subr.mxu0 0.0
    %419 = vmatpush1.msra.mxu0 0.0
    %420 = vmatprep.subr.mxu0 0.0
    %421 = vmatpush1.msra.mxu0 0.0
    %422 = vmatprep.subr.mxu0 0.0
    %423 = vmatpush1.msra.mxu0 0.0
    %424 = vmatprep.subr.mxu0 0.0
    %425 = vmatpush1.msra.mxu0 0.0
    %426 = vmatprep.subr.mxu0 0.0
    %427 = vmatpush1.msra.mxu0 0.0
    %428 = vmatprep.subr.mxu0 0.0
    %429 = vmatpush1.msra.mxu0 0.0
    %430 = vmatprep.subr.mxu0 0.0
    %431 = vmatpush1.msra.mxu0 0.0
    %432 = vmatprep.subr.mxu0 0.0
    %433 = vmatpush1.msra.mxu0 0.0
    %434 = vmatprep.subr.mxu0 0.0
    %435 = vmatpush1.msra.mxu0 0.0
    %436 = vmatprep.mubr.f32.mxu0 0.0
    %437 = vmatmul.mubr.f32.gmra.mrb[0].mxu0 %v370
    %v438 = vpop.f32.mrb[0].mxu0
    %v439 = vadd.f32 0.0, %v438
    %v440 = vpop.f32.mrb[0].mxu0
    %441 = vdwg.mxu0
    %v443 = vrot.slane %v439, 6
    %v445 = vadd.f32 %v142, %v443
    %v446 = vxor.u32 %v445, 2147483648
    %v447 = vmul.f32 %v446, 1.442695
    %v448 = vpow.pop %v447
    %v449 = vadd.f32 %v448, 1.0
    %v450 = vrcp.pop %v449
    %v451 = vmul.f32 1.0, %v450
    %v452 = vtanh.pop %v445
    %v454 = vrot.slane %v252, 6
    %v456 = vmul.f32 %v451, %v454
    %458 = vrot.lane.b32.xlu0 %v452, 32
    %v459 = vpop.permute.xlu0 %458
    %v461 = vmul.f32 %v451, %v459
    %463 = vrot.lane.b32.xlu0 %v461, 32
    %v464 = vpop.permute.xlu0 %463
    %v466 = vadd.f32 %v456, %v464
    %v467 = vtanh.pop %v466
    %469 = vrot.lane.b32.xlu0 %v467, 32
    %v470 = vpop.permute.xlu0 %469
    %v472 = vmul.f32 %v451, %v470
    %v473 = vrot.slane %v356, 6
    %474 = vrot.lane.b32.xlu0 %v473, 64
    %v475 = vpop.permute.xlu0 %474
    %v476 = vsel %vm160, %v475, 0
    %478 = vmatprep.subr.mxu0 0.0
    %479 = vmatpush1.msra.mxu0 %v156
    %480 = vmatprep.subr.mxu0 0.0
    %481 = vmatpush1.msra.mxu0 %v157
    %482 = vmatprep.subr.mxu0 0.0
    %483 = vmatpush1.msra.mxu0 %v158
    %484 = vmatprep.subr.mxu0 0.0
    %485 = vmatpush1.msra.mxu0 %v159
    %486 = vmatprep.subr.mxu0 0.0
    %487 = vmatpush1.msra.mxu0 0.0
    %488 = vmatprep.subr.mxu0 0.0
    %489 = vmatpush1.msra.mxu0 0.0
    %490 = vmatprep.subr.mxu0 0.0
    %491 = vmatpush1.msra.mxu0 0.0
    %492 = vmatprep.subr.mxu0 0.0
    %493 = vmatpush1.msra.mxu0 0.0
    %494 = vmatprep.subr.mxu0 0.0
    %495 = vmatpush1.msra.mxu0 0.0
    %496 = vmatprep.subr.mxu0 0.0
    %497 = vmatpush1.msra.mxu0 0.0
    %498 = vmatprep.subr.mxu0 0.0
    %499 = vmatpush1.msra.mxu0 0.0
    %500 = vmatprep.subr.mxu0 0.0
    %501 = vmatpush1.msra.mxu0 0.0
    %502 = vmatprep.subr.mxu0 0.0
    %503 = vmatpush1.msra.mxu0 0.0
    %504 = vmatprep.subr.mxu0 0.0
    %505 = vmatpush1.msra.mxu0 0.0
    %506 = vmatprep.subr.mxu0 0.0
    %507 = vmatpush1.msra.mxu0 0.0
    %508 = vmatprep.subr.mxu0 0.0
    %509 = vmatpush1.msra.mxu0 0.0
    %510 = vmatprep.subr.mxu0 0.0
    %511 = vmatpush1.msra.mxu0 0.0
    %512 = vmatprep.subr.mxu0 0.0
    %513 = vmatpush1.msra.mxu0 0.0
    %514 = vmatprep.subr.mxu0 0.0
    %515 = vmatpush1.msra.mxu0 0.0
    %516 = vmatprep.subr.mxu0 0.0
    %517 = vmatpush1.msra.mxu0 0.0
    %518 = vmatprep.subr.mxu0 0.0
    %519 = vmatpush1.msra.mxu0 0.0
    %520 = vmatprep.subr.mxu0 0.0
    %521 = vmatpush1.msra.mxu0 0.0
    %522 = vmatprep.subr.mxu0 0.0
    %523 = vmatpush1.msra.mxu0 0.0
    %524 = vmatprep.subr.mxu0 0.0
    %525 = vmatpush1.msra.mxu0 0.0
    %526 = vmatprep.subr.mxu0 0.0
    %527 = vmatpush1.msra.mxu0 0.0
    %528 = vmatprep.subr.mxu0 0.0
    %529 = vmatpush1.msra.mxu0 0.0
    %530 = vmatprep.subr.mxu0 0.0
    %531 = vmatpush1.msra.mxu0 0.0
    %532 = vmatprep.subr.mxu0 0.0
    %533 = vmatpush1.msra.mxu0 0.0
    %534 = vmatprep.subr.mxu0 0.0
    %535 = vmatpush1.msra.mxu0 0.0
    %536 = vmatprep.subr.mxu0 0.0
    %537 = vmatpush1.msra.mxu0 0.0
    %538 = vmatprep.subr.mxu0 0.0
    %539 = vmatpush1.msra.mxu0 0.0
    %540 = vmatprep.subr.mxu0 0.0
    %541 = vmatpush1.msra.mxu0 0.0
    %542 = vmatprep.mubr.f32.mxu0 0.0
    %543 = vmatmul.mubr.f32.gmra.mrb[0].mxu0 %v476
    %v544 = vpop.f32.mrb[0].mxu0
    %v545 = vadd.f32 0.0, %v544
    %v546 = vpop.f32.mrb[0].mxu0
    %547 = vdwg.mxu0
    %v549 = vrot.slane %v545, 4
    %v551 = vadd.f32 %v150, %v549
    %v552 = vxor.u32 %v551, 2147483648
    %v553 = vmul.f32 %v552, 1.442695
    %v554 = vpow.pop %v553
    %v555 = vadd.f32 %v554, 1.0
    %v556 = vrcp.pop %v555
    %v557 = vmul.f32 1.0, %v556
    %v558 = vtanh.pop %v551
    %v560 = vrot.slane %v350, 2
    %v562 = vmul.f32 %v557, %v560
    %564 = vrot.lane.b32.xlu0 %v558, 32
    %v565 = vpop.permute.xlu0 %564
    %v567 = vmul.f32 %v557, %v565
    %569 = vrot.lane.b32.xlu0 %v567, 32
    %v570 = vpop.permute.xlu0 %569
    %v572 = vadd.f32 %v562, %v570
    %v573 = vtanh.pop %v572
    %575 = vrot.lane.b32.xlu0 %v573, 32
    %v576 = vpop.permute.xlu0 %575
    %v578 = vmul.f32 %v557, %v576
    %580 = vrot.lane.b32.xlu0 %v472, 64
    %v581 = vpop.permute.xlu0 %580
    %s583 = scalar_lea.vmem %s5, 2
    %vm584 = vcmask 257026
    %585 = vst.msk [vmem:[%s583 - $0x2] sm:$0xc] %vm584, %v581
    %587 = vrot.lane.b32.xlu0 %v578, 96
    %v588 = vpop.permute.xlu0 %587
    %s590 = scalar_lea.vmem %s5, 12
    %vm591 = vcmask 521476
    %592 = vst.msk [vmem:[%s590 - $0x4] sm:$0x30] %vm591, %v588
    %v593 = vrot.slane %v472, 2
    %594 = vrot.lane.b32.xlu0 %v593, 64
    %v595 = vpop.permute.xlu0 %594
    %v596 = vsel %vm160, %v595, 0
    %598 = vmatprep.subr.mxu0 0.0
    %599 = vmatpush1.msra.mxu0 %v152
    %600 = vmatprep.subr.mxu0 0.0
    %601 = vmatpush1.msra.mxu0 %v153
    %602 = vmatprep.subr.mxu0 0.0
    %603 = vmatpush1.msra.mxu0 %v154
    %604 = vmatprep.subr.mxu0 0.0
    %605 = vmatpush1.msra.mxu0 %v155
    %606 = vmatprep.subr.mxu0 0.0
    %607 = vmatpush1.msra.mxu0 0.0
    %608 = vmatprep.subr.mxu0 0.0
    %609 = vmatpush1.msra.mxu0 0.0
    %610 = vmatprep.subr.mxu0 0.0
    %611 = vmatpush1.msra.mxu0 0.0
    %612 = vmatprep.subr.mxu0 0.0
    %613 = vmatpush1.msra.mxu0 0.0
    %614 = vmatprep.subr.mxu0 0.0
    %615 = vmatpush1.msra.mxu0 0.0
    %616 = vmatprep.subr.mxu0 0.0
    %617 = vmatpush1.msra.mxu0 0.0
    %618 = vmatprep.subr.mxu0 0.0
    %619 = vmatpush1.msra.mxu0 0.0
    %620 = vmatprep.subr.mxu0 0.0
    %621 = vmatpush1.msra.mxu0 0.0
    %622 = vmatprep.subr.mxu0 0.0
    %623 = vmatpush1.msra.mxu0 0.0
    %624 = vmatprep.subr.mxu0 0.0
    %625 = vmatpush1.msra.mxu0 0.0
    %626 = vmatprep.subr.mxu0 0.0
    %627 = vmatpush1.msra.mxu0 0.0
    %628 = vmatprep.subr.mxu0 0.0
    %629 = vmatpush1.msra.mxu0 0.0
    %630 = vmatprep.subr.mxu0 0.0
    %631 = vmatpush1.msra.mxu0 0.0
    %632 = vmatprep.subr.mxu0 0.0
    %633 = vmatpush1.msra.mxu0 0.0
    %634 = vmatprep.subr.mxu0 0.0
    %635 = vmatpush1.msra.mxu0 0.0
    %636 = vmatprep.subr.mxu0 0.0
    %637 = vmatpush1.msra.mxu0 0.0
    %638 = vmatprep.subr.mxu0 0.0
    %639 = vmatpush1.msra.mxu0 0.0
    %640 = vmatprep.subr.mxu0 0.0
    %641 = vmatpush1.msra.mxu0 0.0
    %642 = vmatprep.subr.mxu0 0.0
    %643 = vmatpush1.msra.mxu0 0.0
    %644 = vmatprep.subr.mxu0 0.0
    %645 = vmatpush1.msra.mxu0 0.0
    %646 = vmatprep.subr.mxu0 0.0
    %647 = vmatpush1.msra.mxu0 0.0
    %648 = vmatprep.subr.mxu0 0.0
    %649 = vmatpush1.msra.mxu0 0.0
    %650 = vmatprep.subr.mxu0 0.0
    %651 = vmatpush1.msra.mxu0 0.0
    %652 = vmatprep.subr.mxu0 0.0
    %653 = vmatpush1.msra.mxu0 0.0
    %654 = vmatprep.subr.mxu0 0.0
    %655 = vmatpush1.msra.mxu0 0.0
    %656 = vmatprep.subr.mxu0 0.0
    %657 = vmatpush1.msra.mxu0 0.0
    %658 = vmatprep.subr.mxu0 0.0
    %659 = vmatpush1.msra.mxu0 0.0
    %660 = vmatprep.subr.mxu0 0.0
    %661 = vmatpush1.msra.mxu0 0.0
    %662 = vmatprep.mubr.f32.mxu0 0.0
    %663 = vmatmul.mubr.f32.gmra.mrb[0].mxu0 %v596
    %v664 = vpop.f32.mrb[0].mxu0
    %v665 = vadd.f32 0.0, %v664
    %v666 = vpop.f32.mrb[0].mxu0
    %667 = vdwg.mxu0
    %v669 = vrot.slane %v665, 4
    %v671 = vadd.f32 %v142, %v669
    %v672 = vxor.u32 %v671, 2147483648
    %v673 = vmul.f32 %v672, 1.442695
    %v674 = vpow.pop %v673
    %v675 = vadd.f32 %v674, 1.0
    %v676 = vrcp.pop %v675
    %v677 = vmul.f32 1.0, %v676
    %v678 = vtanh.pop %v671
    %v680 = vrot.slane %v466, 6
    %v682 = vmul.f32 %v677, %v680
    %684 = vrot.lane.b32.xlu0 %v678, 32
    %v685 = vpop.permute.xlu0 %684
    %v687 = vmul.f32 %v677, %v685
    %689 = vrot.lane.b32.xlu0 %v687, 32
    %v690 = vpop.permute.xlu0 %689
    %v692 = vadd.f32 %v682, %v690
    %v693 = vtanh.pop %v692
    %695 = vrot.lane.b32.xlu0 %v693, 32
    %v696 = vpop.permute.xlu0 %695
    %v698 = vmul.f32 %v677, %v696
    %v699 = vrot.slane %v578, 4
    %700 = vrot.lane.b32.xlu0 %v699, 64
    %v701 = vpop.permute.xlu0 %700
    %v702 = vsel %vm160, %v701, 0
    %704 = vmatprep.subr.mxu0 0.0
    %705 = vmatpush1.msra.mxu0 %v156
    %706 = vmatprep.subr.mxu0 0.0
    %707 = vmatpush1.msra.mxu0 %v157
    %708 = vmatprep.subr.mxu0 0.0
    %709 = vmatpush1.msra.mxu0 %v158
    %710 = vmatprep.subr.mxu0 0.0
    %711 = vmatpush1.msra.mxu0 %v159
    %712 = vmatprep.subr.mxu0 0.0
    %713 = vmatpush1.msra.mxu0 0.0
    %714 = vmatprep.subr.mxu0 0.0
    %715 = vmatpush1.msra.mxu0 0.0
    %716 = vmatprep.subr.mxu0 0.0
    %717 = vmatpush1.msra.mxu0 0.0
    %718 = vmatprep.subr.mxu0 0.0
    %719 = vmatpush1.msra.mxu0 0.0
    %720 = vmatprep.subr.mxu0 0.0
    %721 = vmatpush1.msra.mxu0 0.0
    %722 = vmatprep.subr.mxu0 0.0
    %723 = vmatpush1.msra.mxu0 0.0
    %724 = vmatprep.subr.mxu0 0.0
    %725 = vmatpush1.msra.mxu0 0.0
    %726 = vmatprep.subr.mxu0 0.0
    %727 = vmatpush1.msra.mxu0 0.0
    %728 = vmatprep.subr.mxu0 0.0
    %729 = vmatpush1.msra.mxu0 0.0
    %730 = vmatprep.subr.mxu0 0.0
    %731 = vmatpush1.msra.mxu0 0.0
    %732 = vmatprep.subr.mxu0 0.0
    %733 = vmatpush1.msra.mxu0 0.0
    %734 = vmatprep.subr.mxu0 0.0
    %735 = vmatpush1.msra.mxu0 0.0
    %736 = vmatprep.subr.mxu0 0.0
    %737 = vmatpush1.msra.mxu0 0.0
    %738 = vmatprep.subr.mxu0 0.0
    %739 = vmatpush1.msra.mxu0 0.0
    %740 = vmatprep.subr.mxu0 0.0
    %741 = vmatpush1.msra.mxu0 0.0
    %742 = vmatprep.subr.mxu0 0.0
    %743 = vmatpush1.msra.mxu0 0.0
    %744 = vmatprep.subr.mxu0 0.0
    %745 = vmatpush1.msra.mxu0 0.0
    %746 = vmatprep.subr.mxu0 0.0
    %747 = vmatpush1.msra.mxu0 0.0
    %748 = vmatprep.subr.mxu0 0.0
    %749 = vmatpush1.msra.mxu0 0.0
    %750 = vmatprep.subr.mxu0 0.0
    %751 = vmatpush1.msra.mxu0 0.0
    %752 = vmatprep.subr.mxu0 0.0
    %753 = vmatpush1.msra.mxu0 0.0
    %754 = vmatprep.subr.mxu0 0.0
    %755 = vmatpush1.msra.mxu0 0.0
    %756 = vmatprep.subr.mxu0 0.0
    %757 = vmatpush1.msra.mxu0 0.0
    %758 = vmatprep.subr.mxu0 0.0
    %759 = vmatpush1.msra.mxu0 0.0
    %760 = vmatprep.subr.mxu0 0.0
    %761 = vmatpush1.msra.mxu0 0.0
    %762 = vmatprep.subr.mxu0 0.0
    %763 = vmatpush1.msra.mxu0 0.0
    %764 = vmatprep.subr.mxu0 0.0
    %765 = vmatpush1.msra.mxu0 0.0
    %766 = vmatprep.subr.mxu0 0.0
    %767 = vmatpush1.msra.mxu0 0.0
    %768 = vmatprep.mubr.f32.mxu0 0.0
    %769 = vmatmul.mubr.f32.gmra.mrb[0].mxu0 %v702
    %v770 = vpop.f32.mrb[0].mxu0
    %v771 = vadd.f32 0.0, %v770
    %v772 = vpop.f32.mrb[0].mxu0
    %773 = vdwg.mxu0
    %v775 = vrot.slane %v771, 6
    %v777 = vadd.f32 %v150, %v775
    %v778 = vxor.u32 %v777, 2147483648
    %v779 = vmul.f32 %v778, 1.442695
    %v780 = vpow.pop %v779
    %v781 = vadd.f32 %v780, 1.0
    %v782 = vrcp.pop %v781
    %v783 = vmul.f32 1.0, %v782
    %v784 = vtanh.pop %v777
    %v786 = vrot.slane %v572, 2
    %v788 = vmul.f32 %v783, %v786
    %790 = vrot.lane.b32.xlu0 %v784, 32
    %v791 = vpop.permute.xlu0 %790
    %v793 = vmul.f32 %v783, %v791
    %795 = vrot.lane.b32.xlu0 %v793, 32
    %v796 = vpop.permute.xlu0 %795
    %v798 = vadd.f32 %v788, %v796
    %v799 = vtanh.pop %v798
    %801 = vrot.lane.b32.xlu0 %v799, 32
    %v802 = vpop.permute.xlu0 %801
    %v804 = vmul.f32 %v783, %v802
    %806 = vrot.lane.b32.xlu0 %v698, 64
    %v807 = vpop.permute.xlu0 %806
    %s809 = scalar_lea.vmem %s5, 4
    %vm810 = vcmask 259076
    %811 = vst.msk [vmem:[%s809 - $0x4] sm:$0x30] %vm810, %v807
    %813 = vrot.lane.b32.xlu0 %v804, 96
    %v814 = vpop.permute.xlu0 %813
    %s816 = scalar_lea.vmem %s5, 10
    %vm817 = vcmask 519426
    %818 = vst.msk [vmem:[%s816 - $0x2] sm:$0xc] %vm817, %v814
    %v819 = vrot.slane %v698, 4
    %820 = vrot.lane.b32.xlu0 %v819, 64
    %v821 = vpop.permute.xlu0 %820
    %v822 = vsel %vm160, %v821, 0
    %824 = vmatprep.subr.mxu0 0.0
    %825 = vmatpush1.msra.mxu0 %v152
    %826 = vmatprep.subr.mxu0 0.0
    %827 = vmatpush1.msra.mxu0 %v153
    %828 = vmatprep.subr.mxu0 0.0
    %829 = vmatpush1.msra.mxu0 %v154
    %830 = vmatprep.subr.mxu0 0.0
    %831 = vmatpush1.msra.mxu0 %v155
    %832 = vmatprep.subr.mxu0 0.0
    %833 = vmatpush1.msra.mxu0 0.0
    %834 = vmatprep.subr.mxu0 0.0
    %835 = vmatpush1.msra.mxu0 0.0
    %836 = vmatprep.subr.mxu0 0.0
    %837 = vmatpush1.msra.mxu0 0.0
    %838 = vmatprep.subr.mxu0 0.0
    %839 = vmatpush1.msra.mxu0 0.0
    %840 = vmatprep.subr.mxu0 0.0
    %841 = vmatpush1.msra.mxu0 0.0
    %842 = vmatprep.subr.mxu0 0.0
    %843 = vmatpush1.msra.mxu0 0.0
    %844 = vmatprep.subr.mxu0 0.0
    %845 = vmatpush1.msra.mxu0 0.0
    %846 = vmatprep.subr.mxu0 0.0
    %847 = vmatpush1.msra.mxu0 0.0
    %848 = vmatprep.subr.mxu0 0.0
    %849 = vmatpush1.msra.mxu0 0.0
    %850 = vmatprep.subr.mxu0 0.0
    %851 = vmatpush1.msra.mxu0 0.0
    %852 = vmatprep.subr.mxu0 0.0
    %853 = vmatpush1.msra.mxu0 0.0
    %854 = vmatprep.subr.mxu0 0.0
    %855 = vmatpush1.msra.mxu0 0.0
    %856 = vmatprep.subr.mxu0 0.0
    %857 = vmatpush1.msra.mxu0 0.0
    %858 = vmatprep.subr.mxu0 0.0
    %859 = vmatpush1.msra.mxu0 0.0
    %860 = vmatprep.subr.mxu0 0.0
    %861 = vmatpush1.msra.mxu0 0.0
    %862 = vmatprep.subr.mxu0 0.0
    %863 = vmatpush1.msra.mxu0 0.0
    %864 = vmatprep.subr.mxu0 0.0
    %865 = vmatpush1.msra.mxu0 0.0
    %866 = vmatprep.subr.mxu0 0.0
    %867 = vmatpush1.msra.mxu0 0.0
    %868 = vmatprep.subr.mxu0 0.0
    %869 = vmatpush1.msra.mxu0 0.0
    %870 = vmatprep.subr.mxu0 0.0
    %871 = vmatpush1.msra.mxu0 0.0
    %872 = vmatprep.subr.mxu0 0.0
    %873 = vmatpush1.msra.mxu0 0.0
    %874 = vmatprep.subr.mxu0 0.0
    %875 = vmatpush1.msra.mxu0 0.0
    %876 = vmatprep.subr.mxu0 0.0
    %877 = vmatpush1.msra.mxu0 0.0
    %878 = vmatprep.subr.mxu0 0.0
    %879 = vmatpush1.msra.mxu0 0.0
    %880 = vmatprep.subr.mxu0 0.0
    %881 = vmatpush1.msra.mxu0 0.0
    %882 = vmatprep.subr.mxu0 0.0
    %883 = vmatpush1.msra.mxu0 0.0
    %884 = vmatprep.subr.mxu0 0.0
    %885 = vmatpush1.msra.mxu0 0.0
    %886 = vmatprep.subr.mxu0 0.0
    %887 = vmatpush1.msra.mxu0 0.0
    %888 = vmatprep.mubr.f32.mxu0 0.0
    %889 = vmatmul.mubr.f32.gmra.mrb[0].mxu0 %v822
    %v890 = vpop.f32.mrb[0].mxu0
    %v891 = vadd.f32 0.0, %v890
    %v892 = vpop.f32.mrb[0].mxu0
    %893 = vdwg.mxu0
    %v895 = vrot.slane %v891, 2
    %v897 = vadd.f32 %v142, %v895
    %v898 = vxor.u32 %v897, 2147483648
    %v899 = vmul.f32 %v898, 1.442695
    %v900 = vpow.pop %v899
    %v901 = vadd.f32 %v900, 1.0
    %v902 = vrcp.pop %v901
    %v903 = vmul.f32 1.0, %v902
    %v904 = vtanh.pop %v897
    %v906 = vrot.slane %v692, 6
    %v908 = vmul.f32 %v903, %v906
    %910 = vrot.lane.b32.xlu0 %v904, 32
    %v911 = vpop.permute.xlu0 %910
    %v913 = vmul.f32 %v903, %v911
    %915 = vrot.lane.b32.xlu0 %v913, 32
    %v916 = vpop.permute.xlu0 %915
    %v918 = vadd.f32 %v908, %v916
    %v919 = vtanh.pop %v918
    %921 = vrot.lane.b32.xlu0 %v919, 32
    %v922 = vpop.permute.xlu0 %921
    %v924 = vmul.f32 %v903, %v922
    %v925 = vrot.slane %v804, 2
    %926 = vrot.lane.b32.xlu0 %v925, 64
    %v927 = vpop.permute.xlu0 %926
    %v928 = vsel %vm160, %v927, 0
    %930 = vmatprep.subr.mxu0 0.0
    %931 = vmatpush1.msra.mxu0 %v156
    %932 = vmatprep.subr.mxu0 0.0
    %933 = vmatpush1.msra.mxu0 %v157
    %934 = vmatprep.subr.mxu0 0.0
    %935 = vmatpush1.msra.mxu0 %v158
    %936 = vmatprep.subr.mxu0 0.0
    %937 = vmatpush1.msra.mxu0 %v159
    %938 = vmatprep.subr.mxu0 0.0
    %939 = vmatpush1.msra.mxu0 0.0
    %940 = vmatprep.subr.mxu0 0.0
    %941 = vmatpush1.msra.mxu0 0.0
    %942 = vmatprep.subr.mxu0 0.0
    %943 = vmatpush1.msra.mxu0 0.0
    %944 = vmatprep.subr.mxu0 0.0
    %945 = vmatpush1.msra.mxu0 0.0
    %946 = vmatprep.subr.mxu0 0.0
    %947 = vmatpush1.msra.mxu0 0.0
    %948 = vmatprep.subr.mxu0 0.0
    %949 = vmatpush1.msra.mxu0 0.0
    %950 = vmatprep.subr.mxu0 0.0
    %951 = vmatpush1.msra.mxu0 0.0
    %952 = vmatprep.subr.mxu0 0.0
    %953 = vmatpush1.msra.mxu0 0.0
    %954 = vmatprep.subr.mxu0 0.0
    %955 = vmatpush1.msra.mxu0 0.0
    %956 = vmatprep.subr.mxu0 0.0
    %957 = vmatpush1.msra.mxu0 0.0
    %958 = vmatprep.subr.mxu0 0.0
    %959 = vmatpush1.msra.mxu0 0.0
    %960 = vmatprep.subr.mxu0 0.0
    %961 = vmatpush1.msra.mxu0 0.0
    %962 = vmatprep.subr.mxu0 0.0
    %963 = vmatpush1.msra.mxu0 0.0
    %964 = vmatprep.subr.mxu0 0.0
    %965 = vmatpush1.msra.mxu0 0.0
    %966 = vmatprep.subr.mxu0 0.0
    %967 = vmatpush1.msra.mxu0 0.0
    %968 = vmatprep.subr.mxu0 0.0
    %969 = vmatpush1.msra.mxu0 0.0
    %970 = vmatprep.subr.mxu0 0.0
    %971 = vmatpush1.msra.mxu0 0.0
    %972 = vmatprep.subr.mxu0 0.0
    %973 = vmatpush1.msra.mxu0 0.0
    %974 = vmatprep.subr.mxu0 0.0
    %975 = vmatpush1.msra.mxu0 0.0
    %976 = vmatprep.subr.mxu0 0.0
    %977 = vmatpush1.msra.mxu0 0.0
    %978 = vmatprep.subr.mxu0 0.0
    %979 = vmatpush1.msra.mxu0 0.0
    %980 = vmatprep.subr.mxu0 0.0
    %981 = vmatpush1.msra.mxu0 0.0
    %982 = vmatprep.subr.mxu0 0.0
    %983 = vmatpush1.msra.mxu0 0.0
    %984 = vmatprep.subr.mxu0 0.0
    %985 = vmatpush1.msra.mxu0 0.0
    %986 = vmatprep.subr.mxu0 0.0
    %987 = vmatpush1.msra.mxu0 0.0
    %988 = vmatprep.subr.mxu0 0.0
    %989 = vmatpush1.msra.mxu0 0.0
    %990 = vmatprep.subr.mxu0 0.0
    %991 = vmatpush1.msra.mxu0 0.0
    %992 = vmatprep.subr.mxu0 0.0
    %993 = vmatpush1.msra.mxu0 0.0
    %994 = vmatprep.mubr.f32.mxu0 0.0
    %995 = vmatmul.mubr.f32.gmra.mrb[0].mxu0 %v928
    %v996 = vpop.f32.mrb[0].mxu0
    %v997 = vadd.f32 0.0, %v996
    %v998 = vpop.f32.mrb[0].mxu0
    %999 = vdwg.mxu0
    %v1000 = vadd.f32 %v150, %v997
    %v1001 = vxor.u32 %v1000, 2147483648
    %v1002 = vmul.f32 %v1001, 1.442695
    %v1003 = vpow.pop %v1002
    %v1004 = vadd.f32 %v1003, 1.0
    %v1005 = vrcp.pop %v1004
    %v1006 = vmul.f32 1.0, %v1005
    %v1007 = vtanh.pop %v1000
    %v1009 = vrot.slane %v798, 2
    %v1011 = vmul.f32 %v1006, %v1009
    %1013 = vrot.lane.b32.xlu0 %v1007, 32
    %v1014 = vpop.permute.xlu0 %1013
    %v1016 = vmul.f32 %v1006, %v1014
    %1018 = vrot.lane.b32.xlu0 %v1016, 32
    %v1019 = vpop.permute.xlu0 %1018
    %v1021 = vadd.f32 %v1011, %v1019
    %v1022 = vtanh.pop %v1021
    %1024 = vrot.lane.b32.xlu0 %v1022, 32
    %v1025 = vpop.permute.xlu0 %1024
    %v1027 = vmul.f32 %v1006, %v1025
    %1029 = vrot.lane.b32.xlu0 %v924, 64
    %v1030 = vpop.permute.xlu0 %1029
    %s1032 = scalar_lea.vmem %s5, 6
    %vm1033 = vcmask 261126
    %1034 = vst.msk [vmem:[%s1032 - $0x6] sm:$0xc0] %vm1033, %v1030
    %1036 = vrot.lane.b32.xlu0 %v1027, 96
    %v1037 = vpop.permute.xlu0 %1036
    %s1039 = scalar_lea.vmem %s5, 8
    %vm1040 = vcmask 517376
    %1041 = vst.msk [vmem:[%s1039] sm:$0x3] %vm1040, %v1037
    %v1042 = vrot.slane %v924, 6
    %1043 = vrot.lane.b32.xlu0 %v1042, 64
    %v1044 = vpop.permute.xlu0 %1043
    %v1045 = vsel %vm160, %v1044, 0
    %1047 = vmatprep.subr.mxu0 0.0
    %1048 = vmatpush1.msra.mxu0 %v152
    %1049 = vmatprep.subr.mxu0 0.0
    %1050 = vmatpush1.msra.mxu0 %v153
    %1051 = vmatprep.subr.mxu0 0.0
    %1052 = vmatpush1.msra.mxu0 %v154
    %1053 = vmatprep.subr.mxu0 0.0
    %1054 = vmatpush1.msra.mxu0 %v155
    %1055 = vmatprep.subr.mxu0 0.0
    %1056 = vmatpush1.msra.mxu0 0.0
    %1057 = vmatprep.subr.mxu0 0.0
    %1058 = vmatpush1.msra.mxu0 0.0
    %1059 = vmatprep.subr.mxu0 0.0
    %1060 = vmatpush1.msra.mxu0 0.0
    %1061 = vmatprep.subr.mxu0 0.0
    %1062 = vmatpush1.msra.mxu0 0.0
    %1063 = vmatprep.subr.mxu0 0.0
    %1064 = vmatpush1.msra.mxu0 0.0
    %1065 = vmatprep.subr.mxu0 0.0
    %1066 = vmatpush1.msra.mxu0 0.0
    %1067 = vmatprep.subr.mxu0 0.0
    %1068 = vmatpush1.msra.mxu0 0.0
    %1069 = vmatprep.subr.mxu0 0.0
    %1070 = vmatpush1.msra.mxu0 0.0
    %1071 = vmatprep.subr.mxu0 0.0
    %1072 = vmatpush1.msra.mxu0 0.0
    %1073 = vmatprep.subr.mxu0 0.0
    %1074 = vmatpush1.msra.mxu0 0.0
    %1075 = vmatprep.subr.mxu0 0.0
    %1076 = vmatpush1.msra.mxu0 0.0
    %1077 = vmatprep.subr.mxu0 0.0
    %1078 = vmatpush1.msra.mxu0 0.0
    %1079 = vmatprep.subr.mxu0 0.0
    %1080 = vmatpush1.msra.mxu0 0.0
    %1081 = vmatprep.subr.mxu0 0.0
    %1082 = vmatpush1.msra.mxu0 0.0
    %1083 = vmatprep.subr.mxu0 0.0
    %1084 = vmatpush1.msra.mxu0 0.0
    %1085 = vmatprep.subr.mxu0 0.0
    %1086 = vmatpush1.msra.mxu0 0.0
    %1087 = vmatprep.subr.mxu0 0.0
    %1088 = vmatpush1.msra.mxu0 0.0
    %1089 = vmatprep.subr.mxu0 0.0
    %1090 = vmatpush1.msra.mxu0 0.0
    %1091 = vmatprep.subr.mxu0 0.0
    %1092 = vmatpush1.msra.mxu0 0.0
    %1093 = vmatprep.subr.mxu0 0.0
    %1094 = vmatpush1.msra.mxu0 0.0
    %1095 = vmatprep.subr.mxu0 0.0
    %1096 = vmatpush1.msra.mxu0 0.0
    %1097 = vmatprep.subr.mxu0 0.0
    %1098 = vmatpush1.msra.mxu0 0.0
    %1099 = vmatprep.subr.mxu0 0.0
    %1100 = vmatpush1.msra.mxu0 0.0
    %1101 = vmatprep.subr.mxu0 0.0
    %1102 = vmatpush1.msra.mxu0 0.0
    %1103 = vmatprep.subr.mxu0 0.0
    %1104 = vmatpush1.msra.mxu0 0.0
    %1105 = vmatprep.subr.mxu0 0.0
    %1106 = vmatpush1.msra.mxu0 0.0
    %1107 = vmatprep.subr.mxu0 0.0
    %1108 = vmatpush1.msra.mxu0 0.0
    %1109 = vmatprep.subr.mxu0 0.0
    %1110 = vmatpush1.msra.mxu0 0.0
    %1111 = vmatprep.mubr.f32.mxu0 0.0
    %1112 = vmatmul.mubr.f32.gmra.mrb[0].mxu0 %v1045
    %v1113 = vpop.f32.mrb[0].mxu0
    %v1114 = vadd.f32 0.0, %v1113
    %v1115 = vpop.f32.mrb[0].mxu0
    %1116 = vdwg.mxu0
    %v1117 = vadd.f32 %v148, %v1114
    %v1118 = vxor.u32 %v1117, 2147483648
    %v1119 = vmul.f32 %v1118, 1.442695
    %v1120 = vpow.pop %v1119
    %v1121 = vadd.f32 %v1120, 1.0
    %v1122 = vrcp.pop %v1121
    %v1123 = vmul.f32 1.0, %v1122
    %v1124 = vtanh.pop %v1117
    %v1126 = vrot.slane %v918, 6
    %v1128 = vmul.f32 %v1123, %v1126
    %1130 = vrot.lane.b32.xlu0 %v1124, 32
    %v1131 = vpop.permute.xlu0 %1130
    %v1133 = vmul.f32 %v1123, %v1131
    %1135 = vrot.lane.b32.xlu0 %v1133, 32
    %v1136 = vpop.permute.xlu0 %1135
    %v1138 = vadd.f32 %v1128, %v1136
    %v1139 = vtanh.pop %v1138
    %1141 = vrot.lane.b32.xlu0 %v1139, 32
    %v1142 = vpop.permute.xlu0 %1141
    %v1144 = vmul.f32 %v1123, %v1142
    %1145 = vrot.lane.b32.xlu0 %v1027, 64
    %v1146 = vpop.permute.xlu0 %1145
    %v1147 = vsel %vm160, %v1146, 0
    %1149 = vmatprep.subr.mxu0 0.0
    %1150 = vmatpush1.msra.mxu0 %v156
    %1151 = vmatprep.subr.mxu0 0.0
    %1152 = vmatpush1.msra.mxu0 %v157
    %1153 = vmatprep.subr.mxu0 0.0
    %1154 = vmatpush1.msra.mxu0 %v158
    %1155 = vmatprep.subr.mxu0 0.0
    %1156 = vmatpush1.msra.mxu0 %v159
    %1157 = vmatprep.subr.mxu0 0.0
    %1158 = vmatpush1.msra.mxu0 0.0
    %1159 = vmatprep.subr.mxu0 0.0
    %1160 = vmatpush1.msra.mxu0 0.0
    %1161 = vmatprep.subr.mxu0 0.0
    %1162 = vmatpush1.msra.mxu0 0.0
    %1163 = vmatprep.subr.mxu0 0.0
    %1164 = vmatpush1.msra.mxu0 0.0
    %1165 = vmatprep.subr.mxu0 0.0
    %1166 = vmatpush1.msra.mxu0 0.0
    %1167 = vmatprep.subr.mxu0 0.0
    %1168 = vmatpush1.msra.mxu0 0.0
    %1169 = vmatprep.subr.mxu0 0.0
    %1170 = vmatpush1.msra.mxu0 0.0
    %1171 = vmatprep.subr.mxu0 0.0
    %1172 = vmatpush1.msra.mxu0 0.0
    %1173 = vmatprep.subr.mxu0 0.0
    %1174 = vmatpush1.msra.mxu0 0.0
    %1175 = vmatprep.subr.mxu0 0.0
    %1176 = vmatpush1.msra.mxu0 0.0
    %1177 = vmatprep.subr.mxu0 0.0
    %1178 = vmatpush1.msra.mxu0 0.0
    %1179 = vmatprep.subr.mxu0 0.0
    %1180 = vmatpush1.msra.mxu0 0.0
    %1181 = vmatprep.subr.mxu0 0.0
    %1182 = vmatpush1.msra.mxu0 0.0
    %1183 = vmatprep.subr.mxu0 0.0
    %1184 = vmatpush1.msra.mxu0 0.0
    %1185 = vmatprep.subr.mxu0 0.0
    %1186 = vmatpush1.msra.mxu0 0.0
    %1187 = vmatprep.subr.mxu0 0.0
    %1188 = vmatpush1.msra.mxu0 0.0
    %1189 = vmatprep.subr.mxu0 0.0
    %1190 = vmatpush1.msra.mxu0 0.0
    %1191 = vmatprep.subr.mxu0 0.0
    %1192 = vmatpush1.msra.mxu0 0.0
    %1193 = vmatprep.subr.mxu0 0.0
    %1194 = vmatpush1.msra.mxu0 0.0
    %1195 = vmatprep.subr.mxu0 0.0
    %1196 = vmatpush1.msra.mxu0 0.0
    %1197 = vmatprep.subr.mxu0 0.0
    %1198 = vmatpush1.msra.mxu0 0.0
    %1199 = vmatprep.subr.mxu0 0.0
    %1200 = vmatpush1.msra.mxu0 0.0
    %1201 = vmatprep.subr.mxu0 0.0
    %1202 = vmatpush1.msra.mxu0 0.0
    %1203 = vmatprep.subr.mxu0 0.0
    %1204 = vmatpush1.msra.mxu0 0.0
    %1205 = vmatprep.subr.mxu0 0.0
    %1206 = vmatpush1.msra.mxu0 0.0
    %1207 = vmatprep.subr.mxu0 0.0
    %1208 = vmatpush1.msra.mxu0 0.0
    %1209 = vmatprep.subr.mxu0 0.0
    %1210 = vmatpush1.msra.mxu0 0.0
    %1211 = vmatprep.subr.mxu0 0.0
    %1212 = vmatpush1.msra.mxu0 0.0
    %1213 = vmatprep.mubr.f32.mxu0 0.0
    %1214 = vmatmul.mubr.f32.gmra.mrb[0].mxu0 %v1147
    %v1215 = vpop.f32.mrb[0].mxu0
    %v1216 = vadd.f32 0.0, %v1215
    %v1217 = vpop.f32.mrb[0].mxu0
    %1218 = vdwg.mxu0
    %v1220 = vrot.slane %v1216, 2
    %v1222 = vadd.f32 %v144, %v1220
    %v1223 = vxor.u32 %v1222, 2147483648
    %v1224 = vmul.f32 %v1223, 1.442695
    %v1225 = vpow.pop %v1224
    %v1226 = vadd.f32 %v1225, 1.0
    %v1227 = vrcp.pop %v1226
    %v1228 = vmul.f32 1.0, %v1227
    %v1229 = vtanh.pop %v1222
    %v1231 = vrot.slane %v1021, 2
    %v1233 = vmul.f32 %v1228, %v1231
    %1235 = vrot.lane.b32.xlu0 %v1229, 32
    %v1236 = vpop.permute.xlu0 %1235
    %v1238 = vmul.f32 %v1228, %v1236
    %1240 = vrot.lane.b32.xlu0 %v1238, 32
    %v1241 = vpop.permute.xlu0 %1240
    %v1243 = vadd.f32 %v1233, %v1241
    %v1244 = vtanh.pop %v1243
    %1246 = vrot.lane.b32.xlu0 %v1244, 32
    %v1247 = vpop.permute.xlu0 %1246
    %v1249 = vmul.f32 %v1228, %v1247
    %1251 = vrot.lane.b32.xlu0 %v1144, 64
    %v1252 = vpop.permute.xlu0 %1251
    %1254 = vst.msk [vmem:[%s1039] sm:$0x3] %vm361, %v1252
    %1256 = vrot.lane.b32.xlu0 %v1249, 96
    %v1257 = vpop.permute.xlu0 %1256
    %1259 = vst.msk [vmem:[%s1032 - $0x6] sm:$0xc0] %vm368, %v1257
    %v1260 = vsel %vm160, %v1252, 0
    %1262 = vmatprep.subr.mxu0 0.0
    %1263 = vmatpush1.msra.mxu0 %v152
    %1264 = vmatprep.subr.mxu0 0.0
    %1265 = vmatpush1.msra.mxu0 %v153
    %1266 = vmatprep.subr.mxu0 0.0
    %1267 = vmatpush1.msra.mxu0 %v154
    %1268 = vmatprep.subr.mxu0 0.0
    %1269 = vmatpush1.msra.mxu0 %v155
    %1270 = vmatprep.subr.mxu0 0.0
    %1271 = vmatpush1.msra.mxu0 0.0
    %1272 = vmatprep.subr.mxu0 0.0
    %1273 = vmatpush1.msra.mxu0 0.0
    %1274 = vmatprep.subr.mxu0 0.0
    %1275 = vmatpush1.msra.mxu0 0.0
    %1276 = vmatprep.subr.mxu0 0.0
    %1277 = vmatpush1.msra.mxu0 0.0
    %1278 = vmatprep.subr.mxu0 0.0
    %1279 = vmatpush1.msra.mxu0 0.0
    %1280 = vmatprep.subr.mxu0 0.0
    %1281 = vmatpush1.msra.mxu0 0.0
    %1282 = vmatprep.subr.mxu0 0.0
    %1283 = vmatpush1.msra.mxu0 0.0
    %1284 = vmatprep.subr.mxu0 0.0
    %1285 = vmatpush1.msra.mxu0 0.0
    %1286 = vmatprep.subr.mxu0 0.0
    %1287 = vmatpush1.msra.mxu0 0.0
    %1288 = vmatprep.subr.mxu0 0.0
    %1289 = vmatpush1.msra.mxu0 0.0
    %1290 = vmatprep.subr.mxu0 0.0
    %1291 = vmatpush1.msra.mxu0 0.0
    %1292 = vmatprep.subr.mxu0 0.0
    %1293 = vmatpush1.msra.mxu0 0.0
    %1294 = vmatprep.subr.mxu0 0.0
    %1295 = vmatpush1.msra.mxu0 0.0
    %1296 = vmatprep.subr.mxu0 0.0
    %1297 = vmatpush1.msra.mxu0 0.0
    %1298 = vmatprep.subr.mxu0 0.0
    %1299 = vmatpush1.msra.mxu0 0.0
    %1300 = vmatprep.subr.mxu0 0.0
    %1301 = vmatpush1.msra.mxu0 0.0
    %1302 = vmatprep.subr.mxu0 0.0
    %1303 = vmatpush1.msra.mxu0 0.0
    %1304 = vmatprep.subr.mxu0 0.0
    %1305 = vmatpush1.msra.mxu0 0.0
    %1306 = vmatprep.subr.mxu0 0.0
    %1307 = vmatpush1.msra.mxu0 0.0
    %1308 = vmatprep.subr.mxu0 0.0
    %1309 = vmatpush1.msra.mxu0 0.0
    %1310 = vmatprep.subr.mxu0 0.0
    %1311 = vmatpush1.msra.mxu0 0.0
    %1312 = vmatprep.subr.mxu0 0.0
    %1313 = vmatpush1.msra.mxu0 0.0
    %1314 = vmatprep.subr.mxu0 0.0
    %1315 = vmatpush1.msra.mxu0 0.0
    %1316 = vmatprep.subr.mxu0 0.0
    %1317 = vmatpush1.msra.mxu0 0.0
    %1318 = vmatprep.subr.mxu0 0.0
    %1319 = vmatpush1.msra.mxu0 0.0
    %1320 = vmatprep.subr.mxu0 0.0
    %1321 = vmatpush1.msra.mxu0 0.0
    %1322 = vmatprep.subr.mxu0 0.0
    %1323 = vmatpush1.msra.mxu0 0.0
    %1324 = vmatprep.subr.mxu0 0.0
    %1325 = vmatpush1.msra.mxu0 0.0
    %1326 = vmatprep.mubr.f32.mxu0 0.0
    %1327 = vmatmul.mubr.f32.gmra.mrb[0].mxu0 %v1260
    %v1328 = vpop.f32.mrb[0].mxu0
    %v1329 = vadd.f32 0.0, %v1328
    %v1330 = vpop.f32.mrb[0].mxu0
    %1331 = vdwg.mxu0
    %v1333 = vrot.slane %v1329, 6
    %v1335 = vadd.f32 %v148, %v1333
    %v1336 = vxor.u32 %v1335, 2147483648
    %v1337 = vmul.f32 %v1336, 1.442695
    %v1338 = vpow.pop %v1337
    %v1339 = vadd.f32 %v1338, 1.0
    %v1340 = vrcp.pop %v1339
    %v1341 = vmul.f32 1.0, %v1340
    %v1342 = vtanh.pop %v1335
    %v1344 = vrot.slane %v1138, 6
    %v1346 = vmul.f32 %v1341, %v1344
    %1348 = vrot.lane.b32.xlu0 %v1342, 32
    %v1349 = vpop.permute.xlu0 %1348
    %v1351 = vmul.f32 %v1341, %v1349
    %1353 = vrot.lane.b32.xlu0 %v1351, 32
    %v1354 = vpop.permute.xlu0 %1353
    %v1356 = vadd.f32 %v1346, %v1354
    %v1357 = vtanh.pop %v1356
    %1359 = vrot.lane.b32.xlu0 %v1357, 32
    %v1360 = vpop.permute.xlu0 %1359
    %v1362 = vmul.f32 %v1341, %v1360
    %v1363 = vrot.slane %v1249, 6
    %1364 = vrot.lane.b32.xlu0 %v1363, 64
    %v1365 = vpop.permute.xlu0 %1364
    %v1366 = vsel %vm160, %v1365, 0
    %1368 = vmatprep.subr.mxu0 0.0
    %1369 = vmatpush1.msra.mxu0 %v156
    %1370 = vmatprep.subr.mxu0 0.0
    %1371 = vmatpush1.msra.mxu0 %v157
    %1372 = vmatprep.subr.mxu0 0.0
    %1373 = vmatpush1.msra.mxu0 %v158
    %1374 = vmatprep.subr.mxu0 0.0
    %1375 = vmatpush1.msra.mxu0 %v159
    %1376 = vmatprep.subr.mxu0 0.0
    %1377 = vmatpush1.msra.mxu0 0.0
    %1378 = vmatprep.subr.mxu0 0.0
    %1379 = vmatpush1.msra.mxu0 0.0
    %1380 = vmatprep.subr.mxu0 0.0
    %1381 = vmatpush1.msra.mxu0 0.0
    %1382 = vmatprep.subr.mxu0 0.0
    %1383 = vmatpush1.msra.mxu0 0.0
    %1384 = vmatprep.subr.mxu0 0.0
    %1385 = vmatpush1.msra.mxu0 0.0
    %1386 = vmatprep.subr.mxu0 0.0
    %1387 = vmatpush1.msra.mxu0 0.0
    %1388 = vmatprep.subr.mxu0 0.0
    %1389 = vmatpush1.msra.mxu0 0.0
    %1390 = vmatprep.subr.mxu0 0.0
    %1391 = vmatpush1.msra.mxu0 0.0
    %1392 = vmatprep.subr.mxu0 0.0
    %1393 = vmatpush1.msra.mxu0 0.0
    %1394 = vmatprep.subr.mxu0 0.0
    %1395 = vmatpush1.msra.mxu0 0.0
    %1396 = vmatprep.subr.mxu0 0.0
    %1397 = vmatpush1.msra.mxu0 0.0
    %1398 = vmatprep.subr.mxu0 0.0
    %1399 = vmatpush1.msra.mxu0 0.0
    %1400 = vmatprep.subr.mxu0 0.0
    %1401 = vmatpush1.msra.mxu0 0.0
    %1402 = vmatprep.subr.mxu0 0.0
    %1403 = vmatpush1.msra.mxu0 0.0
    %1404 = vmatprep.subr.mxu0 0.0
    %1405 = vmatpush1.msra.mxu0 0.0
    %1406 = vmatprep.subr.mxu0 0.0
    %1407 = vmatpush1.msra.mxu0 0.0
    %1408 = vmatprep.subr.mxu0 0.0
    %1409 = vmatpush1.msra.mxu0 0.0
    %1410 = vmatprep.subr.mxu0 0.0
    %1411 = vmatpush1.msra.mxu0 0.0
    %1412 = vmatprep.subr.mxu0 0.0
    %1413 = vmatpush1.msra.mxu0 0.0
    %1414 = vmatprep.subr.mxu0 0.0
    %1415 = vmatpush1.msra.mxu0 0.0
    %1416 = vmatprep.subr.mxu0 0.0
    %1417 = vmatpush1.msra.mxu0 0.0
    %1418 = vmatprep.subr.mxu0 0.0
    %1419 = vmatpush1.msra.mxu0 0.0
    %1420 = vmatprep.subr.mxu0 0.0
    %1421 = vmatpush1.msra.mxu0 0.0
    %1422 = vmatprep.subr.mxu0 0.0
    %1423 = vmatpush1.msra.mxu0 0.0
    %1424 = vmatprep.subr.mxu0 0.0
    %1425 = vmatpush1.msra.mxu0 0.0
    %1426 = vmatprep.subr.mxu0 0.0
    %1427 = vmatpush1.msra.mxu0 0.0
    %1428 = vmatprep.subr.mxu0 0.0
    %1429 = vmatpush1.msra.mxu0 0.0
    %1430 = vmatprep.subr.mxu0 0.0
    %1431 = vmatpush1.msra.mxu0 0.0
    %1432 = vmatprep.mubr.f32.mxu0 0.0
    %1433 = vmatmul.mubr.f32.gmra.mrb[0].mxu0 %v1366
    %v1434 = vpop.f32.mrb[0].mxu0
    %v1435 = vadd.f32 0.0, %v1434
    %v1436 = vpop.f32.mrb[0].mxu0
    %1437 = vdwg.mxu0
    %v1439 = vrot.slane %v1435, 4
    %v1441 = vadd.f32 %v144, %v1439
    %v1442 = vxor.u32 %v1441, 2147483648
    %v1443 = vmul.f32 %v1442, 1.442695
    %v1444 = vpow.pop %v1443
    %v1445 = vadd.f32 %v1444, 1.0
    %v1446 = vrcp.pop %v1445
    %v1447 = vmul.f32 1.0, %v1446
    %v1448 = vtanh.pop %v1441
    %v1450 = vrot.slane %v1243, 2
    %v1452 = vmul.f32 %v1447, %v1450
    %1454 = vrot.lane.b32.xlu0 %v1448, 32
    %v1455 = vpop.permute.xlu0 %1454
    %v1457 = vmul.f32 %v1447, %v1455
    %1459 = vrot.lane.b32.xlu0 %v1457, 32
    %v1460 = vpop.permute.xlu0 %1459
    %v1462 = vadd.f32 %v1452, %v1460
    %v1463 = vtanh.pop %v1462
    %1465 = vrot.lane.b32.xlu0 %v1463, 32
    %v1466 = vpop.permute.xlu0 %1465
    %v1468 = vmul.f32 %v1447, %v1466
    %1470 = vrot.lane.b32.xlu0 %v1362, 64
    %v1471 = vpop.permute.xlu0 %1470
    %1473 = vst.msk [vmem:[%s816 - $0x2] sm:$0xc] %vm584, %v1471
    %1475 = vrot.lane.b32.xlu0 %v1468, 96
    %v1476 = vpop.permute.xlu0 %1475
    %1478 = vst.msk [vmem:[%s809 - $0x4] sm:$0x30] %vm591, %v1476
    %v1479 = vrot.slane %v1362, 2
    %1480 = vrot.lane.b32.xlu0 %v1479, 64
    %v1481 = vpop.permute.xlu0 %1480
    %v1482 = vsel %vm160, %v1481, 0
    %1484 = vmatprep.subr.mxu0 0.0
    %1485 = vmatpush1.msra.mxu0 %v152
    %1486 = vmatprep.subr.mxu0 0.0
    %1487 = vmatpush1.msra.mxu0 %v153
    %1488 = vmatprep.subr.mxu0 0.0
    %1489 = vmatpush1.msra.mxu0 %v154
    %1490 = vmatprep.subr.mxu0 0.0
    %1491 = vmatpush1.msra.mxu0 %v155
    %1492 = vmatprep.subr.mxu0 0.0
    %1493 = vmatpush1.msra.mxu0 0.0
    %1494 = vmatprep.subr.mxu0 0.0
    %1495 = vmatpush1.msra.mxu0 0.0
    %1496 = vmatprep.subr.mxu0 0.0
    %1497 = vmatpush1.msra.mxu0 0.0
    %1498 = vmatprep.subr.mxu0 0.0
    %1499 = vmatpush1.msra.mxu0 0.0
    %1500 = vmatprep.subr.mxu0 0.0
    %1501 = vmatpush1.msra.mxu0 0.0
    %1502 = vmatprep.subr.mxu0 0.0
    %1503 = vmatpush1.msra.mxu0 0.0
    %1504 = vmatprep.subr.mxu0 0.0
    %1505 = vmatpush1.msra.mxu0 0.0
    %1506 = vmatprep.subr.mxu0 0.0
    %1507 = vmatpush1.msra.mxu0 0.0
    %1508 = vmatprep.subr.mxu0 0.0
    %1509 = vmatpush1.msra.mxu0 0.0
    %1510 = vmatprep.subr.mxu0 0.0
    %1511 = vmatpush1.msra.mxu0 0.0
    %1512 = vmatprep.subr.mxu0 0.0
    %1513 = vmatpush1.msra.mxu0 0.0
    %1514 = vmatprep.subr.mxu0 0.0
    %1515 = vmatpush1.msra.mxu0 0.0
    %1516 = vmatprep.subr.mxu0 0.0
    %1517 = vmatpush1.msra.mxu0 0.0
    %1518 = vmatprep.subr.mxu0 0.0
    %1519 = vmatpush1.msra.mxu0 0.0
    %1520 = vmatprep.subr.mxu0 0.0
    %1521 = vmatpush1.msra.mxu0 0.0
    %1522 = vmatprep.subr.mxu0 0.0
    %1523 = vmatpush1.msra.mxu0 0.0
    %1524 = vmatprep.subr.mxu0 0.0
    %1525 = vmatpush1.msra.mxu0 0.0
    %1526 = vmatprep.subr.mxu0 0.0
    %1527 = vmatpush1.msra.mxu0 0.0
    %1528 = vmatprep.subr.mxu0 0.0
    %1529 = vmatpush1.msra.mxu0 0.0
    %1530 = vmatprep.subr.mxu0 0.0
    %1531 = vmatpush1.msra.mxu0 0.0
    %1532 = vmatprep.subr.mxu0 0.0
    %1533 = vmatpush1.msra.mxu0 0.0
    %1534 = vmatprep.subr.mxu0 0.0
    %1535 = vmatpush1.msra.mxu0 0.0
    %1536 = vmatprep.subr.mxu0 0.0
    %1537 = vmatpush1.msra.mxu0 0.0
    %1538 = vmatprep.subr.mxu0 0.0
    %1539 = vmatpush1.msra.mxu0 0.0
    %1540 = vmatprep.subr.mxu0 0.0
    %1541 = vmatpush1.msra.mxu0 0.0
    %1542 = vmatprep.subr.mxu0 0.0
    %1543 = vmatpush1.msra.mxu0 0.0
    %1544 = vmatprep.subr.mxu0 0.0
    %1545 = vmatpush1.msra.mxu0 0.0
    %1546 = vmatprep.subr.mxu0 0.0
    %1547 = vmatpush1.msra.mxu0 0.0
    %1548 = vmatprep.mubr.f32.mxu0 0.0
    %1549 = vmatmul.mubr.f32.gmra.mrb[0].mxu0 %v1482
    %v1550 = vpop.f32.mrb[0].mxu0
    %v1551 = vadd.f32 0.0, %v1550
    %v1552 = vpop.f32.mrb[0].mxu0
    %1553 = vdwg.mxu0
    %v1555 = vrot.slane %v1551, 4
    %v1557 = vadd.f32 %v148, %v1555
    %v1558 = vxor.u32 %v1557, 2147483648
    %v1559 = vmul.f32 %v1558, 1.442695
    %v1560 = vpow.pop %v1559
    %v1561 = vadd.f32 %v1560, 1.0
    %v1562 = vrcp.pop %v1561
    %v1563 = vmul.f32 1.0, %v1562
    %v1564 = vtanh.pop %v1557
    %v1566 = vrot.slane %v1356, 6
    %v1568 = vmul.f32 %v1563, %v1566
    %1570 = vrot.lane.b32.xlu0 %v1564, 32
    %v1571 = vpop.permute.xlu0 %1570
    %v1573 = vmul.f32 %v1563, %v1571
    %1575 = vrot.lane.b32.xlu0 %v1573, 32
    %v1576 = vpop.permute.xlu0 %1575
    %v1578 = vadd.f32 %v1568, %v1576
    %v1579 = vtanh.pop %v1578
    %1581 = vrot.lane.b32.xlu0 %v1579, 32
    %v1582 = vpop.permute.xlu0 %1581
    %v1584 = vmul.f32 %v1563, %v1582
    %v1585 = vrot.slane %v1468, 4
    %1586 = vrot.lane.b32.xlu0 %v1585, 64
    %v1587 = vpop.permute.xlu0 %1586
    %v1588 = vsel %vm160, %v1587, 0
    %1590 = vmatprep.subr.mxu0 0.0
    %1591 = vmatpush1.msra.mxu0 %v156
    %1592 = vmatprep.subr.mxu0 0.0
    %1593 = vmatpush1.msra.mxu0 %v157
    %1594 = vmatprep.subr.mxu0 0.0
    %1595 = vmatpush1.msra.mxu0 %v158
    %1596 = vmatprep.subr.mxu0 0.0
    %1597 = vmatpush1.msra.mxu0 %v159
    %1598 = vmatprep.subr.mxu0 0.0
    %1599 = vmatpush1.msra.mxu0 0.0
    %1600 = vmatprep.subr.mxu0 0.0
    %1601 = vmatpush1.msra.mxu0 0.0
    %1602 = vmatprep.subr.mxu0 0.0
    %1603 = vmatpush1.msra.mxu0 0.0
    %1604 = vmatprep.subr.mxu0 0.0
    %1605 = vmatpush1.msra.mxu0 0.0
    %1606 = vmatprep.subr.mxu0 0.0
    %1607 = vmatpush1.msra.mxu0 0.0
    %1608 = vmatprep.subr.mxu0 0.0
    %1609 = vmatpush1.msra.mxu0 0.0
    %1610 = vmatprep.subr.mxu0 0.0
    %1611 = vmatpush1.msra.mxu0 0.0
    %1612 = vmatprep.subr.mxu0 0.0
    %1613 = vmatpush1.msra.mxu0 0.0
    %1614 = vmatprep.subr.mxu0 0.0
    %1615 = vmatpush1.msra.mxu0 0.0
    %1616 = vmatprep.subr.mxu0 0.0
    %1617 = vmatpush1.msra.mxu0 0.0
    %1618 = vmatprep.subr.mxu0 0.0
    %1619 = vmatpush1.msra.mxu0 0.0
    %1620 = vmatprep.subr.mxu0 0.0
    %1621 = vmatpush1.msra.mxu0 0.0
    %1622 = vmatprep.subr.mxu0 0.0
    %1623 = vmatpush1.msra.mxu0 0.0
    %1624 = vmatprep.subr.mxu0 0.0
    %1625 = vmatpush1.msra.mxu0 0.0
    %1626 = vmatprep.subr.mxu0 0.0
    %1627 = vmatpush1.msra.mxu0 0.0
    %1628 = vmatprep.subr.mxu0 0.0
    %1629 = vmatpush1.msra.mxu0 0.0
    %1630 = vmatprep.subr.mxu0 0.0
    %1631 = vmatpush1.msra.mxu0 0.0
    %1632 = vmatprep.subr.mxu0 0.0
    %1633 = vmatpush1.msra.mxu0 0.0
    %1634 = vmatprep.subr.mxu0 0.0
    %1635 = vmatpush1.msra.mxu0 0.0
    %1636 = vmatprep.subr.mxu0 0.0
    %1637 = vmatpush1.msra.mxu0 0.0
    %1638 = vmatprep.subr.mxu0 0.0
    %1639 = vmatpush1.msra.mxu0 0.0
    %1640 = vmatprep.subr.mxu0 0.0
    %1641 = vmatpush1.msra.mxu0 0.0
    %1642 = vmatprep.subr.mxu0 0.0
    %1643 = vmatpush1.msra.mxu0 0.0
    %1644 = vmatprep.subr.mxu0 0.0
    %1645 = vmatpush1.msra.mxu0 0.0
    %1646 = vmatprep.subr.mxu0 0.0
    %1647 = vmatpush1.msra.mxu0 0.0
    %1648 = vmatprep.subr.mxu0 0.0
    %1649 = vmatpush1.msra.mxu0 0.0
    %1650 = vmatprep.subr.mxu0 0.0
    %1651 = vmatpush1.msra.mxu0 0.0
    %1652 = vmatprep.subr.mxu0 0.0
    %1653 = vmatpush1.msra.mxu0 0.0
    %1654 = vmatprep.mubr.f32.mxu0 0.0
    %1655 = vmatmul.mubr.f32.gmra.mrb[0].mxu0 %v1588
    %v1656 = vpop.f32.mrb[0].mxu0
    %v1657 = vadd.f32 0.0, %v1656
    %v1658 = vpop.f32.mrb[0].mxu0
    %1659 = vdwg.mxu0
    %v1661 = vrot.slane %v1657, 6
    %v1663 = vadd.f32 %v144, %v1661
    %v1664 = vxor.u32 %v1663, 2147483648
    %v1665 = vmul.f32 %v1664, 1.442695
    %v1666 = vpow.pop %v1665
    %v1667 = vadd.f32 %v1666, 1.0
    %v1668 = vrcp.pop %v1667
    %v1669 = vmul.f32 1.0, %v1668
    %v1670 = vtanh.pop %v1663
    %v1672 = vrot.slane %v1462, 2
    %v1674 = vmul.f32 %v1669, %v1672
    %1676 = vrot.lane.b32.xlu0 %v1670, 32
    %v1677 = vpop.permute.xlu0 %1676
    %v1679 = vmul.f32 %v1669, %v1677
    %1681 = vrot.lane.b32.xlu0 %v1679, 32
    %v1682 = vpop.permute.xlu0 %1681
    %v1684 = vadd.f32 %v1674, %v1682
    %v1685 = vtanh.pop %v1684
    %1687 = vrot.lane.b32.xlu0 %v1685, 32
    %v1688 = vpop.permute.xlu0 %1687
    %v1690 = vmul.f32 %v1669, %v1688
    %1692 = vrot.lane.b32.xlu0 %v1584, 64
    %v1693 = vpop.permute.xlu0 %1692
    %1695 = vst.msk [vmem:[%s590 - $0x4] sm:$0x30] %vm810, %v1693
    %1697 = vrot.lane.b32.xlu0 %v1690, 96
    %v1698 = vpop.permute.xlu0 %1697
    %1700 = vst.msk [vmem:[%s583 - $0x2] sm:$0xc] %vm817, %v1698
    %v1701 = vrot.slane %v1584, 4
    %1702 = vrot.lane.b32.xlu0 %v1701, 64
    %v1703 = vpop.permute.xlu0 %1702
    %v1704 = vsel %vm160, %v1703, 0
    %1706 = vmatprep.subr.mxu0 0.0
    %1707 = vmatpush1.msra.mxu0 %v152
    %1708 = vmatprep.subr.mxu0 0.0
    %1709 = vmatpush1.msra.mxu0 %v153
    %1710 = vmatprep.subr.mxu0 0.0
    %1711 = vmatpush1.msra.mxu0 %v154
    %1712 = vmatprep.subr.mxu0 0.0
    %1713 = vmatpush1.msra.mxu0 %v155
    %1714 = vmatprep.subr.mxu0 0.0
    %1715 = vmatpush1.msra.mxu0 0.0
    %1716 = vmatprep.subr.mxu0 0.0
    %1717 = vmatpush1.msra.mxu0 0.0
    %1718 = vmatprep.subr.mxu0 0.0
    %1719 = vmatpush1.msra.mxu0 0.0
    %1720 = vmatprep.subr.mxu0 0.0
    %1721 = vmatpush1.msra.mxu0 0.0
    %1722 = vmatprep.subr.mxu0 0.0
    %1723 = vmatpush1.msra.mxu0 0.0
    %1724 = vmatprep.subr.mxu0 0.0
    %1725 = vmatpush1.msra.mxu0 0.0
    %1726 = vmatprep.subr.mxu0 0.0
    %1727 = vmatpush1.msra.mxu0 0.0
    %1728 = vmatprep.subr.mxu0 0.0
    %1729 = vmatpush1.msra.mxu0 0.0
    %1730 = vmatprep.subr.mxu0 0.0
    %1731 = vmatpush1.msra.mxu0 0.0
    %1732 = vmatprep.subr.mxu0 0.0
    %1733 = vmatpush1.msra.mxu0 0.0
    %1734 = vmatprep.subr.mxu0 0.0
    %1735 = vmatpush1.msra.mxu0 0.0
    %1736 = vmatprep.subr.mxu0 0.0
    %1737 = vmatpush1.msra.mxu0 0.0
    %1738 = vmatprep.subr.mxu0 0.0
    %1739 = vmatpush1.msra.mxu0 0.0
    %1740 = vmatprep.subr.mxu0 0.0
    %1741 = vmatpush1.msra.mxu0 0.0
    %1742 = vmatprep.subr.mxu0 0.0
    %1743 = vmatpush1.msra.mxu0 0.0
    %1744 = vmatprep.subr.mxu0 0.0
    %1745 = vmatpush1.msra.mxu0 0.0
    %1746 = vmatprep.subr.mxu0 0.0
    %1747 = vmatpush1.msra.mxu0 0.0
    %1748 = vmatprep.subr.mxu0 0.0
    %1749 = vmatpush1.msra.mxu0 0.0
    %1750 = vmatprep.subr.mxu0 0.0
    %1751 = vmatpush1.msra.mxu0 0.0
    %1752 = vmatprep.subr.mxu0 0.0
    %1753 = vmatpush1.msra.mxu0 0.0
    %1754 = vmatprep.subr.mxu0 0.0
    %1755 = vmatpush1.msra.mxu0 0.0
    %1756 = vmatprep.subr.mxu0 0.0
    %1757 = vmatpush1.msra.mxu0 0.0
    %1758 = vmatprep.subr.mxu0 0.0
    %1759 = vmatpush1.msra.mxu0 0.0
    %1760 = vmatprep.subr.mxu0 0.0
    %1761 = vmatpush1.msra.mxu0 0.0
    %1762 = vmatprep.subr.mxu0 0.0
    %1763 = vmatpush1.msra.mxu0 0.0
    %1764 = vmatprep.subr.mxu0 0.0
    %1765 = vmatpush1.msra.mxu0 0.0
    %1766 = vmatprep.subr.mxu0 0.0
    %1767 = vmatpush1.msra.mxu0 0.0
    %1768 = vmatprep.subr.mxu0 0.0
    %1769 = vmatpush1.msra.mxu0 0.0
    %1770 = vmatprep.mubr.f32.mxu0 0.0
    %1771 = vmatmul.mubr.f32.gmra.mrb[0].mxu0 %v1704
    %v1772 = vpop.f32.mrb[0].mxu0
    %v1773 = vadd.f32 0.0, %v1772
    %v1774 = vpop.f32.mrb[0].mxu0
    %1775 = vdwg.mxu0
    %v1777 = vrot.slane %v1773, 2
    %v1779 = vadd.f32 %v148, %v1777
    %v1780 = vxor.u32 %v1779, 2147483648
    %v1781 = vmul.f32 %v1780, 1.442695
    %v1782 = vpow.pop %v1781
    %v1783 = vadd.f32 %v1782, 1.0
    %v1784 = vrcp.pop %v1783
    %v1785 = vmul.f32 1.0, %v1784
    %v1786 = vtanh.pop %v1779
    %v1788 = vrot.slane %v1578, 6
    %v1790 = vmul.f32 %v1785, %v1788
    %1792 = vrot.lane.b32.xlu0 %v1786, 32
    %v1793 = vpop.permute.xlu0 %1792
    %v1795 = vmul.f32 %v1785, %v1793
    %1797 = vrot.lane.b32.xlu0 %v1795, 32
    %v1798 = vpop.permute.xlu0 %1797
    %v1800 = vadd.f32 %v1790, %v1798
    %v1801 = vtanh.pop %v1800
    %1803 = vrot.lane.b32.xlu0 %v1801, 32
    %v1804 = vpop.permute.xlu0 %1803
    %v1806 = vmul.f32 %v1785, %v1804
    %v1807 = vrot.slane %v1690, 2
    %1808 = vrot.lane.b32.xlu0 %v1807, 64
    %v1809 = vpop.permute.xlu0 %1808
    %v1810 = vsel %vm160, %v1809, 0
    %1812 = vmatprep.subr.mxu0 0.0
    %1813 = vmatpush1.msra.mxu0 %v156
    %1814 = vmatprep.subr.mxu0 0.0
    %1815 = vmatpush1.msra.mxu0 %v157
    %1816 = vmatprep.subr.mxu0 0.0
    %1817 = vmatpush1.msra.mxu0 %v158
    %1818 = vmatprep.subr.mxu0 0.0
    %1819 = vmatpush1.msra.mxu0 %v159
    %1820 = vmatprep.subr.mxu0 0.0
    %1821 = vmatpush1.msra.mxu0 0.0
    %1822 = vmatprep.subr.mxu0 0.0
    %1823 = vmatpush1.msra.mxu0 0.0
    %1824 = vmatprep.subr.mxu0 0.0
    %1825 = vmatpush1.msra.mxu0 0.0
    %1826 = vmatprep.subr.mxu0 0.0
    %1827 = vmatpush1.msra.mxu0 0.0
    %1828 = vmatprep.subr.mxu0 0.0
    %1829 = vmatpush1.msra.mxu0 0.0
    %1830 = vmatprep.subr.mxu0 0.0
    %1831 = vmatpush1.msra.mxu0 0.0
    %1832 = vmatprep.subr.mxu0 0.0
    %1833 = vmatpush1.msra.mxu0 0.0
    %1834 = vmatprep.subr.mxu0 0.0
    %1835 = vmatpush1.msra.mxu0 0.0
    %1836 = vmatprep.subr.mxu0 0.0
    %1837 = vmatpush1.msra.mxu0 0.0
    %1838 = vmatprep.subr.mxu0 0.0
    %1839 = vmatpush1.msra.mxu0 0.0
    %1840 = vmatprep.subr.mxu0 0.0
    %1841 = vmatpush1.msra.mxu0 0.0
    %1842 = vmatprep.subr.mxu0 0.0
    %1843 = vmatpush1.msra.mxu0 0.0
    %1844 = vmatprep.subr.mxu0 0.0
    %1845 = vmatpush1.msra.mxu0 0.0
    %1846 = vmatprep.subr.mxu0 0.0
    %1847 = vmatpush1.msra.mxu0 0.0
    %1848 = vmatprep.subr.mxu0 0.0
    %1849 = vmatpush1.msra.mxu0 0.0
    %1850 = vmatprep.subr.mxu0 0.0
    %1851 = vmatpush1.msra.mxu0 0.0
    %1852 = vmatprep.subr.mxu0 0.0
    %1853 = vmatpush1.msra.mxu0 0.0
    %1854 = vmatprep.subr.mxu0 0.0
    %1855 = vmatpush1.msra.mxu0 0.0
    %1856 = vmatprep.subr.mxu0 0.0
    %1857 = vmatpush1.msra.mxu0 0.0
    %1858 = vmatprep.subr.mxu0 0.0
    %1859 = vmatpush1.msra.mxu0 0.0
    %1860 = vmatprep.subr.mxu0 0.0
    %1861 = vmatpush1.msra.mxu0 0.0
    %1862 = vmatprep.subr.mxu0 0.0
    %1863 = vmatpush1.msra.mxu0 0.0
    %1864 = vmatprep.subr.mxu0 0.0
    %1865 = vmatpush1.msra.mxu0 0.0
    %1866 = vmatprep.subr.mxu0 0.0
    %1867 = vmatpush1.msra.mxu0 0.0
    %1868 = vmatprep.subr.mxu0 0.0
    %1869 = vmatpush1.msra.mxu0 0.0
    %1870 = vmatprep.subr.mxu0 0.0
    %1871 = vmatpush1.msra.mxu0 0.0
    %1872 = vmatprep.subr.mxu0 0.0
    %1873 = vmatpush1.msra.mxu0 0.0
    %1874 = vmatprep.subr.mxu0 0.0
    %1875 = vmatpush1.msra.mxu0 0.0
    %1876 = vmatprep.mubr.f32.mxu0 0.0
    %1877 = vmatmul.mubr.f32.gmra.mrb[0].mxu0 %v1810
    %v1878 = vpop.f32.mrb[0].mxu0
    %v1879 = vadd.f32 0.0, %v1878
    %v1880 = vpop.f32.mrb[0].mxu0
    %1881 = vdwg.mxu0
    %v1882 = vadd.f32 %v144, %v1879
    %v1883 = vxor.u32 %v1882, 2147483648
    %v1884 = vmul.f32 %v1883, 1.442695
    %v1885 = vpow.pop %v1884
    %v1886 = vadd.f32 %v1885, 1.0
    %v1887 = vrcp.pop %v1886
    %v1888 = vmul.f32 1.0, %v1887
    %v1889 = vtanh.pop %v1882
    %v1891 = vrot.slane %v1684, 2
    %v1893 = vmul.f32 %v1888, %v1891
    %1895 = vrot.lane.b32.xlu0 %v1889, 32
    %v1896 = vpop.permute.xlu0 %1895
    %v1898 = vmul.f32 %v1888, %v1896
    %1900 = vrot.lane.b32.xlu0 %v1898, 32
    %v1901 = vpop.permute.xlu0 %1900
    %v1903 = vadd.f32 %v1893, %v1901
    %v1904 = vtanh.pop %v1903
    %1906 = vrot.lane.b32.xlu0 %v1904, 32
    %v1907 = vpop.permute.xlu0 %1906
    %v1909 = vmul.f32 %v1888, %v1907
    %1911 = vrot.lane.b32.xlu0 %v1806, 64
    %v1912 = vpop.permute.xlu0 %1911
    %1914 = vst.msk [vmem:[%s367 - $0x6] sm:$0xc0] %vm1033, %v1912
    %1916 = vrot.lane.b32.xlu0 %v1909, 96
    %v1917 = vpop.permute.xlu0 %1916
    %1919 = vst.msk [vmem:[%s5] sm:$0x3] %vm1040, %v1917
    %1920 = vst.msk [vmem:[#allocation5 - $0x6] sm:$0xc0] %vm1033, %v1912
    %1921 = vrot.lane.b32.xlu0 %v1909, 64
    %v1922 = vpop.permute.xlu0 %1921
    %s1924 = scalar_lea.vmem [#allocation5], 2
    %1925 = vst.msk [vmem:[%s1924] sm:$0x3] %vm361, %v1922
    %1927 = vrot.lane.b32.xlu0 %v1800, 96
    %v1928 = vpop.permute.xlu0 %1927
    %1930 = vst.msk [vmem:[#allocation6 - $0x6] sm:$0xc0] %vm1033, %v1928
    %1932 = vrot.lane.b32.xlu0 %v1903, 96
    %v1933 = vpop.permute.xlu0 %1932
    %s1935 = scalar_lea.vmem [#allocation6], 2
    %1936 = vst.msk [vmem:[%s1935] sm:$0x3] %vm361, %v1933
    // Predicated region
    $region26: #{rnn_encoder.1} parent=1 // pred_check
      _
    $region27: #{rnn_encoder.1} parent=1 // pred_check_branch
      %1938 = sbr.rel (0) target = $region29
    $region28: #{rnn_encoder.1} parent=1 // pred_region
      _
    $region29: #{rnn_encoder.1} parent=1 // pred_fallthru
      _
    // Predicated region
    $region30: #{rnn_encoder.1} parent=1 // pred_check
      _
    $region31: #{rnn_encoder.1} parent=1 // pred_check_branch
      %1940 = sbr.rel (0) target = $region33
    $region32: #{rnn_encoder.1} parent=1 // pred_region
      %s1942 = ssub.s32 64, 64
      %1943 = vsyncadd [#allocation4], %s1942
      %s1944 = sshll.u32 [#allocation5], 4
      %s1945 = int_to_ptr.vmem [resolvable:$true] %s1944
      %1950 = dma.vmem_to_hbm [thread:$0]  %s1945, 64, %s6, [#allocation4], 32, 32, 2
    $region33: #{rnn_encoder.1} parent=1 // pred_fallthru
      _
    // Predicated region
    $region34: #{rnn_encoder.1} parent=1 // pred_check
      _
    $region35: #{rnn_encoder.1} parent=1 // pred_check_branch
      %1952 = sbr.rel (0) target = $region37
    $region36: #{rnn_encoder.1} parent=1 // pred_region
      %s1954 = ssub.s32 64, 64
      %1955 = vsyncadd [#allocation7], %s1954
      %s1956 = sshll.u32 [#allocation6], 4
      %s1957 = int_to_ptr.vmem [resolvable:$true] %s1956
      %1962 = dma.vmem_to_hbm [thread:$0]  %s1957, 64, %s7, [#allocation7], 32, 32, 2
    $region37: #{rnn_encoder.1} parent=1 // pred_fallthru
      _
    // Predicated region
    $region38: #{rnn_encoder.1} parent=1 // pred_check
      _
    $region39: #{rnn_encoder.1} parent=1 // pred_check_branch
      %1964 = sbr.rel (0) target = $region41
    $region40: #{rnn_encoder.1} parent=1 // pred_region
      _
    $region41: #{rnn_encoder.1} parent=1 // pred_fallthru
      _
    // Predicated region
    $region42: #{rnn_encoder.1} parent=1 // pred_check
      _
    $region43: #{rnn_encoder.1} parent=1 // pred_check_branch
      %1966 = sbr.rel (0) target = $region45
    $region44: #{rnn_encoder.1} parent=1 // pred_region
      %1967 = dma.done [#allocation4], 64
    $region45: #{rnn_encoder.1} parent=1 // pred_fallthru
      _
    // Predicated region
    $region46: #{rnn_encoder.1} parent=1 // pred_check
      _
    $region47: #{rnn_encoder.1} parent=1 // pred_check_branch
      %1969 = sbr.rel (0) target = $region49
    $region48: #{rnn_encoder.1} parent=1 // pred_region
      %1970 = dma.done [#allocation7], 64
    $region49: #{rnn_encoder.1} parent=1 // pred_fallthru
      _
    %1971 = vsyncpa [#allocation3], 1
    %1972 = vsyncpa [#allocation4], 1
    %1973 = vsyncpa [#allocation7], 1

</llo_original>
